<compile_context>
chip_gen: v5e
topology: v5e:2x2
jax: 0.10.0
libtpu: 0.0.40
codegen_flags: <defaults>
</compile_context>

<pallas_src>
import functools

import jax
import jax.numpy as jnp
import numpy as np
from jax.experimental import pallas as pl
from jax.experimental.pallas import tpu as pltpu


def _gat_kernel(feat_ref, adj_ref, wbig_ref, wsd_ref, bm_ref, brow_ref, hb_ref,
                out_ref, *, tb, n, att_head, out_dim, leaky_alpha, mm_dtype, approx):
    # feat_ref: (tb*N, Din) f32     adj_ref: (tb, N, N) int8
    # wbig_ref: (Din, H*Dout+Din)   wsd_ref: (H*Dout, 2H)   (both mm_dtype)
    # bm_ref:   (H*N, H*Dout) f32 block-diag selector
    # brow_ref / hb_ref: (1, Din) f32      out_ref: (tb*N, Din) f32
    hdim = att_head * out_dim
    x = feat_ref[...]                                                   # (tb*N, Din) f32
    xm = x.astype(mm_dtype)

    # Fused projection + gate pre-activation: one matmul, columns [heads | gate].
    big = jnp.dot(xm, wbig_ref[...], preferred_element_type=jnp.float32)  # (tb*N, hdim+Din)
    h2 = big[:, :hdim]                                                    # per-head features
    th = jnp.tanh(h2)                                                     # f32 (EUP)

    # Fused per-head src/dst score reductions (block-diagonal weights).
    sd = jnp.dot(th.astype(mm_dtype), wsd_ref[...],
                 preferred_element_type=jnp.float32)                      # (tb*N, 2H)
    sdT = sd.T                                                            # (2H, tb*N)

    bm = bm_ref[...]                                                      # (H*N, hdim) f32

    for b in range(tb):                       # static unroll over batch elements in block
        r0 = b * n
        adj_b = adj_ref[b].astype(jnp.int32)                              # (N, N)

        # Head-stacked logits (N, H*N): column block h holds head h's (N, N) scores.
        src_w = jnp.concatenate(
            [jnp.broadcast_to(sd[r0:r0 + n, h:h + 1], (n, n))
             for h in range(att_head)], axis=-1)                          # (N, H*N)
        dst_w = jnp.concatenate(
            [sdT[att_head + h:att_head + h + 1, r0:r0 + n]
             for h in range(att_head)], axis=-1)                          # (1, H*N)
        lg = src_w + dst_w                                                # (N, H*N)
        lg = jnp.maximum(lg, leaky_alpha * lg)                            # leaky_relu
        adj_w = jnp.concatenate([adj_b] * att_head, axis=-1)              # (N, H*N)
        lg = jnp.where(adj_w > 0, lg, -999.0)                             # masked_fill

        # Softmax per head block.  The mask is head-independent, so a per-row GLOBAL max
        # is a valid (block-constant) shift - one reduce instead of H, same semantics
        # (fully-masked rows still give a uniform distribution like the reference).
        m_row = jnp.max(lg, axis=-1, keepdims=True)                       # (N, 1)
        p = jnp.exp(lg - m_row)                                           # (N, H*N) f32
        denom = jnp.concatenate(
            [jnp.broadcast_to(jnp.sum(p[:, h * n:(h + 1) * n], axis=-1, keepdims=True),
                              (n, out_dim))
             for h in range(att_head)], axis=-1)                          # (N, hdim)

        # Fused per-head context matmul: (N, H*N) @ blockdiag_h(h2_b) -> (N, H*Dout),
        # already in the head-concatenated output layout (no per-head concat needed).
        h2_b = h2[r0:r0 + n, :]                                           # (N, hdim)
        vtile = jnp.concatenate([h2_b] * att_head, axis=0)                # (H*N, hdim)
        ctx = jnp.dot(p.astype(mm_dtype), (vtile * bm).astype(mm_dtype),
                      preferred_element_type=jnp.float32)                 # (N, hdim)

        if approx:
            fo = ctx * pl.reciprocal(denom, approx=True)                  # EUP recip
        else:
            fo = ctx / denom
        fo = fo + brow_ref[...]
        # ELU(alpha=1); clamp the exp argument so the untaken branch cannot overflow.
        fo = jnp.where(fo > 0.0, fo, jnp.exp(jnp.minimum(fo, 0.0)) - 1.0)

        # Gate + residual for this batch element only (keeps the live set small).
        z = big[r0:r0 + n, hdim:] + hb_ref[...]                           # (N, Din)
        if approx:
            gate = pl.reciprocal(1.0 + jnp.exp(-z), approx=True)          # sigmoid
        else:
            gate = 1.0 / (1.0 + jnp.exp(-z))
        out_ref[r0:r0 + n, :] = (gate * fo + (1.0 - gate) * x[r0:r0 + n, :]
                                 ).astype(out_ref.dtype)


def graph_attention_layer_forward(feat_in, adj, params, *, leaky_alpha=0.2,
                                  mm_dtype=jnp.bfloat16, tb=None):
    """Pallas forward of GraphAttentionLayer (eval mode, no dropout).

    feat_in: (B, N, in_dim); adj: (B, N, N) 0/1 mask (any numeric dtype).
    mm_dtype: dtype of MXU operands (bf16 fast path, f32 for exact validation).
    """
    B, N, Din = feat_in.shape
    W = params["W"]
    Hh, _, Dout = W.shape
    hdim = Hh * Dout
    assert Din == hdim
    f32 = jnp.float32

    # --- block-size / grid selection (review: multi-step, even grid, VMEM headroom) ---
    if tb is None:
        tb = B
        while tb % 2 == 0 and (B // tb) < 4:          # prefer >= 4 pipelined steps
            tb //= 2
        while tb % 2 == 0 and (tb // 2) * N >= 512:   # keep blocks >= ~512 rows if possible
            tb //= 2

        def _blk_bytes(t):  # double-buffered feat + out (f32) + adj (int8)
            return 2 * (2 * t * N * Din * 4 + t * N * N)

        while tb % 2 == 0 and _blk_bytes(tb) > 24 * (1 << 20):   # v7x-safe headroom
            tb //= 2
    assert B % tb == 0, "tb must divide B"
    assert (tb * N) % 8 == 0 or B // tb == 1, "tb*N must be sublane (8) aligned"
    grid = (B // tb,)

    # --- fused weights (review: gate projection fused into the head projection) ---
    wc = jnp.transpose(W, (1, 0, 2)).reshape(Din, hdim)                  # [W0|W1|...]
    hwt = params["H_w"].T
    wbig = jnp.concatenate([wc, hwt], axis=1).astype(mm_dtype)           # (Din, hdim+Din)
    wsd_src = jax.scipy.linalg.block_diag(*[params["w_src"][h] for h in range(Hh)])
    wsd_dst = jax.scipy.linalg.block_diag(*[params["w_dst"][h] for h in range(Hh)])
    wsd = jnp.concatenate([wsd_src, wsd_dst], axis=1).astype(mm_dtype)   # (hdim, 2H)
    hb = params["H_b"].reshape(1, Din).astype(f32)
    brow = jnp.tile(params["b"].astype(f32), Hh).reshape(1, Din)         # bias per head
    # Block-diagonal selector for the fused context matmul.
    rh = jnp.repeat(jnp.arange(Hh), N)
    ch = jnp.repeat(jnp.arange(Hh), Dout)
    bm = (rh[:, None] == ch[None, :]).astype(f32)                        # (H*N, hdim)

    feat2 = feat_in.astype(f32).reshape(B * N, Din)                      # lane-dense slab
    adj_i8 = (adj != 0).astype(jnp.int8)                                 # narrow mask DMA

    kern = functools.partial(
        _gat_kernel, tb=tb, n=N, att_head=Hh, out_dim=Dout,
        leaky_alpha=leaky_alpha, mm_dtype=mm_dtype,
        approx=(jnp.dtype(mm_dtype) != jnp.dtype(jnp.float32)))

    out2 = pl.pallas_call(
        kern,
        out_shape=jax.ShapeDtypeStruct((B * N, Din), f32),
        grid_spec=pltpu.PrefetchScalarGridSpec(
            num_scalar_prefetch=0,
            grid=grid,
            in_specs=[
                pl.BlockSpec((tb * N, Din), lambda i: (i, 0)),           # feat slab
                pl.BlockSpec((tb, N, N), lambda i: (i, 0, 0)),           # int8 adjacency
                pl.BlockSpec((Din, hdim + Din), lambda i: (0, 0)),       # [W_heads | H_w^T]
                pl.BlockSpec((hdim, 2 * Hh), lambda i: (0, 0)),          # [w_src | w_dst]
                pl.BlockSpec((Hh * N, hdim), lambda i: (0, 0)),          # head selector
                pl.BlockSpec((1, Din), lambda i: (0, 0)),                # tiled bias b
                pl.BlockSpec((1, Din), lambda i: (0, 0)),                # H bias
            ],
            out_specs=pl.BlockSpec((tb * N, Din), lambda i: (i, 0)),
        ),
        compiler_params=pltpu.CompilerParams(
            dimension_semantics=("parallel",)),
    )(feat2, adj_i8, wbig, wsd, bm, brow, hb)

    return out2.reshape(B, N, Din)


def graph_attention_layer_ref(feat_in, adj, params, leaky_alpha=0.2):
    """Pure-JAX reference mirroring the PyTorch forward (eval mode)."""
    W, b = params["W"], params["b"]
    w_src, w_dst = params["w_src"], params["w_dst"]
    Hw, Hb = params["H_w"], params["H_b"]
    B, N, Din = feat_in.shape
    Hh, _, Dout = W.shape

    h = jnp.einsum("bnd,hde->bhne", feat_in, W)                       # (B,H,N,Dout)
    th = jnp.tanh(h)
    asrc = jnp.einsum("bhne,he->bhn", th, w_src[:, :, 0])[:, :, :, None]
    adst = jnp.einsum("bhne,he->bhn", th, w_dst[:, :, 0])[:, :, :, None]
    attn = asrc + jnp.swapaxes(adst, 2, 3)                            # (B,H,N,N)
    attn = jnp.where(attn >= 0, attn, leaky_alpha * attn)
    attn = jnp.where(adj[:, None, :, :] > 0, attn, -999.0)
    attn = jax.nn.softmax(attn, axis=-1)
    fo = jnp.einsum("bhij,bhjd->bhid", attn, h) + b                   # (B,H,N,Dout)
    fo = jnp.swapaxes(fo, 1, 2).reshape(B, N, Hh * Dout)
    fo = jax.nn.elu(fo)
    gate = jax.nn.sigmoid(feat_in @ Hw.T + Hb)
    return gate * fo + (1.0 - gate) * feat_in


if __name__ == "__main__":
    jax.config.update("jax_default_matmul_precision", "highest")

    B, N = 2, 16
    att_head, out_dim = 4, 8
    in_dim = att_head * out_dim  # 32 (module asserts in_dim == out_dim * att_head)

    key = jax.random.PRNGKey(0)
    ks = jax.random.split(key, 8)

    feat_in = jax.random.normal(ks[0], (B, N, in_dim), jnp.float32)
    adj = jax.random.bernoulli(ks[1], 0.5, (B, N, N)).astype(jnp.float32)
    adj = jnp.maximum(adj, jnp.eye(N, dtype=jnp.float32)[None])  # self-loops

    params = {
        "W":     0.2 * jax.random.normal(ks[2], (att_head, in_dim, out_dim), jnp.float32),
        "b":     0.1 * jax.random.normal(ks[3], (out_dim,), jnp.float32),
        "w_src": 0.2 * jax.random.normal(ks[4], (att_head, out_dim, 1), jnp.float32),
        "w_dst": 0.2 * jax.random.normal(ks[5], (att_head, out_dim, 1), jnp.float32),
        "H_w":   0.2 * jax.random.normal(ks[6], (in_dim, in_dim), jnp.float32),
        "H_b":   0.1 * jax.random.normal(ks[7], (in_dim,), jnp.float32),
    }

    ref = graph_attention_layer_ref(feat_in, adj, params)

    # Exact-precision path (f32 MXU operands, exact reciprocal) for validation.
    out_f32 = jax.block_until_ready(
        graph_attention_layer_forward(feat_in, adj, params, mm_dtype=jnp.float32))
    np.testing.assert_allclose(np.asarray(out_f32), np.asarray(ref), rtol=1e-4, atol=1e-4)

    # Fast path (default): bf16 MXU operands, f32 accumulation + f32 elementwise.
    out_bf16 = jax.block_until_ready(
        graph_attention_layer_forward(feat_in, adj, params))
    np.testing.assert_allclose(np.asarray(out_bf16), np.asarray(ref), rtol=5e-2, atol=5e-2)

    print("KERNEL_OK")
</pallas_src>

<mosaic_0001>
module attributes {stable_mosaic.version = 11 : i64} {
  func.func @_gat_kernel(%arg0: i32, %arg1: memref<16x32xf32, #tpu.memory_space<vmem>>, %arg2: memref<1x16x16xi8, #tpu.memory_space<vmem>>, %arg3: memref<32x64xf32, #tpu.memory_space<vmem>>, %arg4: memref<32x8xf32, #tpu.memory_space<vmem>>, %arg5: memref<64x32xf32, #tpu.memory_space<vmem>>, %arg6: memref<1x32xf32, #tpu.memory_space<vmem>>, %arg7: memref<1x32xf32, #tpu.memory_space<vmem>>, %arg8: memref<16x32xf32, #tpu.memory_space<vmem>>) attributes {dimension_semantics = [#tpu.dimension_semantics<parallel>], iteration_bounds = array<i64: 2>, scalar_prefetch = 0 : i64, scratch_operands = 0 : i64, tpu.core_type = #tpu.core_type<tc>, window_params = [{transform_indices = @transform_0, window_bounds = array<i64: 16, 32>}, {transform_indices = @transform_1, window_bounds = array<i64: 1, 16, 16>}, {pipeline_mode = #tpu.pipeline_mode<synchronous>, transform_indices = @transform_2, window_bounds = array<i64: 32, 64>}, {pipeline_mode = #tpu.pipeline_mode<synchronous>, transform_indices = @transform_3, window_bounds = array<i64: 32, 8>}, {pipeline_mode = #tpu.pipeline_mode<synchronous>, transform_indices = @transform_4, window_bounds = array<i64: 64, 32>}, {pipeline_mode = #tpu.pipeline_mode<synchronous>, transform_indices = @transform_5, window_bounds = array<i64: 1, 32>}, {pipeline_mode = #tpu.pipeline_mode<synchronous>, transform_indices = @transform_6, window_bounds = array<i64: 1, 32>}, {transform_indices = @transform_7, window_bounds = array<i64: 16, 32>}]} {
    %c0 = arith.constant 0 : index
    %c0_0 = arith.constant 0 : index
    %0 = vector.load %arg1[%c0, %c0_0] : memref<16x32xf32, #tpu.memory_space<vmem>>, vector<16x32xf32>
    %c0_1 = arith.constant 0 : index
    %c0_2 = arith.constant 0 : index
    %1 = vector.load %arg3[%c0_1, %c0_2] : memref<32x64xf32, #tpu.memory_space<vmem>>, vector<32x64xf32>
    %cst = arith.constant dense<0.000000e+00> : vector<16x64xf32>
    %2 = tpu.matmul %0, %1, %cst {dimension_numbers = #tpu.dot_dimension_numbers<[1], [0], [0], [1], [0, 0, 1, 1], [], []>, precision = #tpu.contract_precision<fp32>} : vector<16x32xf32>, vector<32x64xf32>, vector<16x64xf32> -> vector<16x64xf32>
    %3 = vector.extract_strided_slice %2 {offsets = [0, 0], sizes = [16, 32], strides = [1, 1]} : vector<16x64xf32> to vector<16x32xf32>
    %4 = math.tanh %3 : vector<16x32xf32>
    %c0_3 = arith.constant 0 : index
    %c0_4 = arith.constant 0 : index
    %5 = vector.load %arg4[%c0_3, %c0_4] : memref<32x8xf32, #tpu.memory_space<vmem>>, vector<32x8xf32>
    %cst_5 = arith.constant dense<0.000000e+00> : vector<16x8xf32>
    %6 = tpu.matmul %4, %5, %cst_5 {dimension_numbers = #tpu.dot_dimension_numbers<[1], [0], [0], [1], [0, 0, 1, 1], [], []>, precision = #tpu.contract_precision<fp32>} : vector<16x32xf32>, vector<32x8xf32>, vector<16x8xf32> -> vector<16x8xf32>
    %7 = tpu.transpose %6, [1, 0] : vector<16x8xf32> -> vector<8x16xf32>
    %c0_6 = arith.constant 0 : index
    %c0_7 = arith.constant 0 : index
    %8 = vector.load %arg5[%c0_6, %c0_7] : memref<64x32xf32, #tpu.memory_space<vmem>>, vector<64x32xf32>
    %c0_8 = arith.constant 0 : index
    %c0_9 = arith.constant 0 : index
    %c0_10 = arith.constant 0 : index
    %9 = vector.load %arg2[%c0_8, %c0_9, %c0_10] : memref<1x16x16xi8, #tpu.memory_space<vmem>>, vector<1x16x16xi8>
    %10 = vector.shape_cast %9 : vector<1x16x16xi8> to vector<16x16xi8>
    %11 = arith.extsi %10 : vector<16x16xi8> to vector<16x16xi32>
    %12 = vector.extract_strided_slice %6 {offsets = [0, 0], sizes = [16, 1], strides = [1, 1]} : vector<16x8xf32> to vector<16x1xf32>
    %13 = vector.shape_cast %12 : vector<16x1xf32> to vector<16x1xf32>
    %14 = vector.broadcast %13 : vector<16x1xf32> to vector<16x16xf32>
    %15 = vector.extract_strided_slice %6 {offsets = [0, 1], sizes = [16, 1], strides = [1, 1]} : vector<16x8xf32> to vector<16x1xf32>
    %16 = vector.shape_cast %15 : vector<16x1xf32> to vector<16x1xf32>
    %17 = vector.broadcast %16 : vector<16x1xf32> to vector<16x16xf32>
    %18 = vector.extract_strided_slice %6 {offsets = [0, 2], sizes = [16, 1], strides = [1, 1]} : vector<16x8xf32> to vector<16x1xf32>
    %19 = vector.shape_cast %18 : vector<16x1xf32> to vector<16x1xf32>
    %20 = vector.broadcast %19 : vector<16x1xf32> to vector<16x16xf32>
    %21 = vector.extract_strided_slice %6 {offsets = [0, 3], sizes = [16, 1], strides = [1, 1]} : vector<16x8xf32> to vector<16x1xf32>
    %22 = vector.shape_cast %21 : vector<16x1xf32> to vector<16x1xf32>
    %23 = vector.broadcast %22 : vector<16x1xf32> to vector<16x16xf32>
    %24 = tpu.concatenate %14, %17, %20, %23 in 1 : vector<16x16xf32>, vector<16x16xf32>, vector<16x16xf32>, vector<16x16xf32> -> vector<16x64xf32>
    %25 = vector.extract_strided_slice %7 {offsets = [4, 0], sizes = [1, 16], strides = [1, 1]} : vector<8x16xf32> to vector<1x16xf32>
    %26 = vector.extract_strided_slice %7 {offsets = [5, 0], sizes = [1, 16], strides = [1, 1]} : vector<8x16xf32> to vector<1x16xf32>
    %27 = vector.extract_strided_slice %7 {offsets = [6, 0], sizes = [1, 16], strides = [1, 1]} : vector<8x16xf32> to vector<1x16xf32>
    %28 = vector.extract_strided_slice %7 {offsets = [7, 0], sizes = [1, 16], strides = [1, 1]} : vector<8x16xf32> to vector<1x16xf32>
    %29 = tpu.concatenate %25, %26, %27, %28 in 1 : vector<1x16xf32>, vector<1x16xf32>, vector<1x16xf32>, vector<1x16xf32> -> vector<1x64xf32>
    %30 = vector.broadcast %29 : vector<1x64xf32> to vector<16x64xf32>
    %31 = arith.addf %24, %30 : vector<16x64xf32>
    %cst_11 = arith.constant 2.000000e-01 : f32
    %32 = vector.broadcast %cst_11 : f32 to vector<16x64xf32>
    %33 = arith.mulf %32, %31 : vector<16x64xf32>
    %34 = arith.maximumf %31, %33 : vector<16x64xf32>
    %35 = tpu.concatenate %11, %11, %11, %11 in 1 : vector<16x16xi32>, vector<16x16xi32>, vector<16x16xi32>, vector<16x16xi32> -> vector<16x64xi32>
    %c0_i32 = arith.constant 0 : i32
    %36 = vector.broadcast %c0_i32 : i32 to vector<16x64xi32>
    %37 = arith.cmpi sgt, %35, %36 : vector<16x64xi32>
    %cst_12 = arith.constant -9.990000e+02 : f32
    %38 = vector.broadcast %cst_12 : f32 to vector<16x64xf32>
    %39 = arith.select %37, %34, %38 : vector<16x64xi1>, vector<16x64xf32>
    %cst_13 = arith.constant dense<0xFF800000> : vector<16xf32>
    %40 = vector.multi_reduction <maximumf>, %39, %cst_13 [1] : vector<16x64xf32> to vector<16xf32>
    %41 = vector.shape_cast %40 : vector<16xf32> to vector<16x1xf32>
    %42 = vector.broadcast %41 : vector<16x1xf32> to vector<16x64xf32>
    %43 = arith.subf %39, %42 : vector<16x64xf32>
    %44 = math.exp %43 : vector<16x64xf32>
    %45 = vector.extract_strided_slice %44 {offsets = [0, 0], sizes = [16, 16], strides = [1, 1]} : vector<16x64xf32> to vector<16x16xf32>
    %cst_14 = arith.constant dense<0.000000e+00> : vector<16xf32>
    %46 = vector.multi_reduction <add>, %45, %cst_14 [1] : vector<16x16xf32> to vector<16xf32>
    %47 = vector.shape_cast %46 : vector<16xf32> to vector<16x1xf32>
    %48 = vector.shape_cast %47 : vector<16x1xf32> to vector<16x1xf32>
    %49 = vector.broadcast %48 : vector<16x1xf32> to vector<16x8xf32>
    %50 = vector.extract_strided_slice %44 {offsets = [0, 16], sizes = [16, 16], strides = [1, 1]} : vector<16x64xf32> to vector<16x16xf32>
    %cst_15 = arith.constant dense<0.000000e+00> : vector<16xf32>
    %51 = vector.multi_reduction <add>, %50, %cst_15 [1] : vector<16x16xf32> to vector<16xf32>
    %52 = vector.shape_cast %51 : vector<16xf32> to vector<16x1xf32>
    %53 = vector.shape_cast %52 : vector<16x1xf32> to vector<16x1xf32>
    %54 = vector.broadcast %53 : vector<16x1xf32> to vector<16x8xf32>
    %55 = vector.extract_strided_slice %44 {offsets = [0, 32], sizes = [16, 16], strides = [1, 1]} : vector<16x64xf32> to vector<16x16xf32>
    %cst_16 = arith.constant dense<0.000000e+00> : vector<16xf32>
    %56 = vector.multi_reduction <add>, %55, %cst_16 [1] : vector<16x16xf32> to vector<16xf32>
    %57 = vector.shape_cast %56 : vector<16xf32> to vector<16x1xf32>
    %58 = vector.shape_cast %57 : vector<16x1xf32> to vector<16x1xf32>
    %59 = vector.broadcast %58 : vector<16x1xf32> to vector<16x8xf32>
    %60 = vector.extract_strided_slice %44 {offsets = [0, 48], sizes = [16, 16], strides = [1, 1]} : vector<16x64xf32> to vector<16x16xf32>
    %cst_17 = arith.constant dense<0.000000e+00> : vector<16xf32>
    %61 = vector.multi_reduction <add>, %60, %cst_17 [1] : vector<16x16xf32> to vector<16xf32>
    %62 = vector.shape_cast %61 : vector<16xf32> to vector<16x1xf32>
    %63 = vector.shape_cast %62 : vector<16x1xf32> to vector<16x1xf32>
    %64 = vector.broadcast %63 : vector<16x1xf32> to vector<16x8xf32>
    %65 = tpu.concatenate %49, %54, %59, %64 in 1 : vector<16x8xf32>, vector<16x8xf32>, vector<16x8xf32>, vector<16x8xf32> -> vector<16x32xf32>
    %66 = tpu.concatenate %3, %3, %3, %3 in 0 : vector<16x32xf32>, vector<16x32xf32>, vector<16x32xf32>, vector<16x32xf32> -> vector<64x32xf32>
    %67 = arith.mulf %66, %8 : vector<64x32xf32>
    %cst_18 = arith.constant dense<0.000000e+00> : vector<16x32xf32>
    %68 = tpu.matmul %44, %67, %cst_18 {dimension_numbers = #tpu.dot_dimension_numbers<[1], [0], [0], [1], [0, 0, 1, 1], [], []>, precision = #tpu.contract_precision<fp32>} : vector<16x64xf32>, vector<64x32xf32>, vector<16x32xf32> -> vector<16x32xf32>
    %69 = arith.divf %68, %65 : vector<16x32xf32>
    %c0_19 = arith.constant 0 : index
    %c0_20 = arith.constant 0 : index
    %70 = vector.load %arg6[%c0_19, %c0_20] : memref<1x32xf32, #tpu.memory_space<vmem>>, vector<1x32xf32>
    %71 = vector.broadcast %70 : vector<1x32xf32> to vector<16x32xf32>
    %72 = arith.addf %69, %71 : vector<16x32xf32>
    %cst_21 = arith.constant 0.000000e+00 : f32
    %73 = vector.broadcast %cst_21 : f32 to vector<16x32xf32>
    %74 = arith.cmpf ogt, %72, %73 : vector<16x32xf32>
    %cst_22 = arith.constant 0.000000e+00 : f32
    %75 = vector.broadcast %cst_22 : f32 to vector<16x32xf32>
    %76 = arith.minimumf %72, %75 : vector<16x32xf32>
    %77 = math.exp %76 : vector<16x32xf32>
    %cst_23 = arith.constant 1.000000e+00 : f32
    %78 = vector.broadcast %cst_23 : f32 to vector<16x32xf32>
    %79 = arith.subf %77, %78 : vector<16x32xf32>
    %80 = arith.select %74, %72, %79 : vector<16x32xi1>, vector<16x32xf32>
    %81 = vector.extract_strided_slice %2 {offsets = [0, 32], sizes = [16, 32], strides = [1, 1]} : vector<16x64xf32> to vector<16x32xf32>
    %c0_24 = arith.constant 0 : index
    %c0_25 = arith.constant 0 : index
    %82 = vector.load %arg7[%c0_24, %c0_25] : memref<1x32xf32, #tpu.memory_space<vmem>>, vector<1x32xf32>
    %83 = vector.broadcast %82 : vector<1x32xf32> to vector<16x32xf32>
    %84 = arith.addf %81, %83 : vector<16x32xf32>
    %cst_26 = arith.constant 0.000000e+00 : f32
    %85 = vector.broadcast %cst_26 : f32 to vector<16x32xf32>
    %86 = arith.subf %85, %84 : vector<16x32xf32>
    %87 = math.exp %86 : vector<16x32xf32>
    %cst_27 = arith.constant 1.000000e+00 : f32
    %88 = vector.broadcast %cst_27 : f32 to vector<16x32xf32>
    %89 = arith.addf %88, %87 : vector<16x32xf32>
    %cst_28 = arith.constant 1.000000e+00 : f32
    %90 = vector.broadcast %cst_28 : f32 to vector<16x32xf32>
    %91 = arith.divf %90, %89 : vector<16x32xf32>
    %92 = arith.mulf %91, %80 : vector<16x32xf32>
    %cst_29 = arith.constant 1.000000e+00 : f32
    %93 = vector.broadcast %cst_29 : f32 to vector<16x32xf32>
    %94 = arith.subf %93, %91 : vector<16x32xf32>
    %95 = arith.mulf %94, %0 : vector<16x32xf32>
    %96 = arith.addf %92, %95 : vector<16x32xf32>
    %c0_30 = arith.constant 0 : index
    %c0_31 = arith.constant 0 : index
    %97 = vector.load %arg8[%c0_30, %c0_31] : memref<16x32xf32, #tpu.memory_space<vmem>>, vector<16x32xf32>
    tpu.vector_store %arg8[%c0_30, %c0_31], %96 {strides = array<i32>} : memref<16x32xf32, #tpu.memory_space<vmem>>, vector<16x32xf32>,
    return
  }
  func.func @transform_0(%arg0: i32) -> (i32, i32) {
    %c0_i32 = arith.constant 0 : i32
    %c0_i32_0 = arith.constant 0 : i32
    return %arg0, %c0_i32 : i32, i32
  }
  func.func @transform_1(%arg0: i32) -> (i32, i32, i32) {
    %c0_i32 = arith.constant 0 : i32
    %c0_i32_0 = arith.constant 0 : i32
    %c0_i32_1 = arith.constant 0 : i32
    return %arg0, %c0_i32, %c0_i32_0 : i32, i32, i32
  }
  func.func @transform_2(%arg0: i32) -> (i32, i32) {
    %c0_i32 = arith.constant 0 : i32
    %c0_i32_0 = arith.constant 0 : i32
    %c0_i32_1 = arith.constant 0 : i32
    return %c0_i32, %c0_i32_0 : i32, i32
  }
  func.func @transform_3(%arg0: i32) -> (i32, i32) {
    %c0_i32 = arith.constant 0 : i32
    %c0_i32_0 = arith.constant 0 : i32
    %c0_i32_1 = arith.constant 0 : i32
    return %c0_i32, %c0_i32_0 : i32, i32
  }
  func.func @transform_4(%arg0: i32) -> (i32, i32) {
    %c0_i32 = arith.constant 0 : i32
    %c0_i32_0 = arith.constant 0 : i32
    %c0_i32_1 = arith.constant 0 : i32
    return %c0_i32, %c0_i32_0 : i32, i32
  }
  func.func @transform_5(%arg0: i32) -> (i32, i32) {
    %c0_i32 = arith.constant 0 : i32
    %c0_i32_0 = arith.constant 0 : i32
    %c0_i32_1 = arith.constant 0 : i32
    return %c0_i32, %c0_i32_0 : i32, i32
  }
  func.func @transform_6(%arg0: i32) -> (i32, i32) {
    %c0_i32 = arith.constant 0 : i32
    %c0_i32_0 = arith.constant 0 : i32
    %c0_i32_1 = arith.constant 0 : i32
    return %c0_i32, %c0_i32_0 : i32, i32
  }
  func.func @transform_7(%arg0: i32) -> (i32, i32) {
    %c0_i32 = arith.constant 0 : i32
    %c0_i32_0 = arith.constant 0 : i32
    return %arg0, %c0_i32 : i32, i32
  }
}

</mosaic_0001>

<llo_original>
// kernel: tpu_custom_call.1
$region0: #{tpu_custom_call.1}
  #allocation0 [shape = 'u32[]', space=smem, size = 0x4, offset = 0x4, fixed_abs, tag = 'smem constant byte address 0x4 - core index']
  #allocation1 [shape = 'u32[72,128]{1,0:T(1,128)}', space=vmem, size = 0x9000, scoped, tag = 'internal scratch']
  %s0 = inlined_call_operand.vmem [shape: f32[32,32], index: 0, kind: input, shape index: {}]
  %s1 = inlined_call_operand.vmem [shape: s8[2,16,16], index: 1, kind: input, shape index: {}]
  %s2 = inlined_call_operand.vmem [shape: f32[32,64], index: 2, kind: input, shape index: {}]
  %s3 = inlined_call_operand.vmem [shape: f32[32,8], index: 3, kind: input, shape index: {}]
  %s4 = inlined_call_operand.vmem [shape: f32[64,32], index: 4, kind: input, shape index: {}]
  %s5 = inlined_call_operand.vmem [shape: f32[1,32], index: 5, kind: input, shape index: {}]
  %s6 = inlined_call_operand.vmem [shape: f32[1,32], index: 6, kind: input, shape index: {}]
  %s7 = inlined_call_operand.hbm [shape: f32[32,32], index: 7, kind: output, shape index: {}]
  %s8 = sld [smem:[#allocation0]]
  $region61: #{tpu_custom_call.1} parent=0
    _
  %s10 = ssub.s32 1, %s8
  %s11 = scalar_select 0, %s10, %s8
  $region1: #{tpu_custom_call.1} parent=0
    #allocation2 [shape = 'u8[16384]{0}', space=vmem, size = 0x4000, scoped, tag = 'output window, operand 0']
    #allocation3 [shape = 's32[2]{0}', space=sflag, size = 0x8, scoped, tag = 'scoped memory for tpu_custom_call.1']
    %12 = vsyncpa [#allocation3], 0
    %s13 = scalar_lea.sflag [#allocation3], 1
    %14 = vsyncpa %s13, 0
    loop: start=0, step=1, limit=4
    $region2: #{tpu_custom_call.1} parent=1 // loop_pre_header
      _
    $region3: #{tpu_custom_call.1} parent=1 // loop_header
      %s16 = sphi 0, %s20
      %p17 = scmp.ge.s32.totalorder %s16, 4
      %s26 = sphi 0, %s28
      %s29 = sphi 0, %s26
      %s30 = sphi 0, %s29
      %s46 = sphi 0, %s30
      %s52 = sphi 0, %s54
      %s55 = sphi 0, %s52
      %s56 = sphi 0, %s55
      %s72 = sphi 0, %s56
      %s76 = sphi 0, %s76
      %s78 = sphi 0, %s76
      %s79 = sphi 0, %s78
      %s93 = sphi 0, %s79
      %s97 = sphi 0, %s97
      %s99 = sphi 0, %s97
      %s100 = sphi 0, %s99
      %s114 = sphi 0, %s100
      %s118 = sphi 0, %s118
      %s120 = sphi 0, %s118
      %s121 = sphi 0, %s120
      %s135 = sphi 0, %s121
      %s139 = sphi 0, %s139
      %s141 = sphi 0, %s139
      %s142 = sphi 0, %s141
      %s156 = sphi 0, %s142
      %s160 = sphi 0, %s160
      %s162 = sphi 0, %s160
      %s163 = sphi 0, %s162
      %s177 = sphi 0, %s163
      %s183 = sphi 0, %s185
      %s186 = sphi 0, %s183
      %s187 = sphi 0, %s186
      %s203 = sphi 0, %s187
    $region4: #{tpu_custom_call.1} parent=1 // loop_header_branch
      %19 = sbr.rel (%p17) target = $region8
    $region5: #{tpu_custom_call.1} parent=1 // loop_body
      %s21 = ssub.s32 %s16, 1
      %s22 = ssub.s32 %s16, 2
      %s23 = sadd.s32 %s16, 1
      %s24 = ssub.s32 %s16, %s23
      %p25 = scmp.eq.s32.totalorder %s24, 0
      %s27 = sadd.s32 %s26, 1
      %s28 = scalar_select %p25, %s26, %s27
      %p31 = pneg %p25
      %p32 = scmp.eq.s32.totalorder %s16, 1
      %p33 = por %p31, %p32
      %p34 = scmp.ne.s32.totalorder %s26, %s29
      %p35 = scmp.eq.s32.totalorder %s16, 0
      %p36 = por %p34, %p35
      %p37 = scmp.ne.s32.totalorder %s26, %s29
      %p38 = scmp.eq.s32.totalorder %s21, 1
      %p39 = por %p37, %p38
      %p40 = scmp.ne.s32.totalorder %s29, %s30
      %p41 = scmp.eq.s32.totalorder %s21, 0
      %p42 = por %p40, %p41
      %p43 = scmp.ne.s32.totalorder %s29, %s30
      %p44 = scmp.eq.s32.totalorder %s22, 1
      %p45 = por %p43, %p44
      %p47 = scmp.ne.s32.totalorder %s30, %s46
      %p48 = scmp.eq.s32.totalorder %s22, 0
      %p49 = por %p47, %p48
      %s50 = ssub.s32 %s16, %s23
      %p51 = scmp.eq.s32.totalorder %s50, 0
      %s53 = sadd.s32 %s52, 1
      %s54 = scalar_select %p51, %s52, %s53
      %p57 = pneg %p51
      %p58 = scmp.eq.s32.totalorder %s16, 1
      %p59 = por %p57, %p58
      %p60 = scmp.ne.s32.totalorder %s52, %s55
      %p61 = scmp.eq.s32.totalorder %s16, 0
      %p62 = por %p60, %p61
      %p63 = scmp.ne.s32.totalorder %s52, %s55
      %p64 = scmp.eq.s32.totalorder %s21, 1
      %p65 = por %p63, %p64
      %p66 = scmp.ne.s32.totalorder %s55, %s56
      %p67 = scmp.eq.s32.totalorder %s21, 0
      %p68 = por %p66, %p67
      %p69 = scmp.ne.s32.totalorder %s55, %s56
      %p70 = scmp.eq.s32.totalorder %s22, 1
      %p71 = por %p69, %p70
      %p73 = scmp.ne.s32.totalorder %s56, %s72
      %p74 = scmp.eq.s32.totalorder %s22, 0
      %p75 = por %p73, %p74
      %s77 = sadd.s32 %s76, 1
      %p80 = scmp.eq.s32.totalorder %s16, 1
      %p81 = scmp.ne.s32.totalorder %s76, %s78
      %p82 = scmp.eq.s32.totalorder %s16, 0
      %p83 = por %p81, %p82
      %p84 = scmp.ne.s32.totalorder %s76, %s78
      %p85 = scmp.eq.s32.totalorder %s21, 1
      %p86 = por %p84, %p85
      %p87 = scmp.ne.s32.totalorder %s78, %s79
      %p88 = scmp.eq.s32.totalorder %s21, 0
      %p89 = por %p87, %p88
      %p90 = scmp.ne.s32.totalorder %s78, %s79
      %p91 = scmp.eq.s32.totalorder %s22, 1
      %p92 = por %p90, %p91
      %p94 = scmp.ne.s32.totalorder %s79, %s93
      %p95 = scmp.eq.s32.totalorder %s22, 0
      %p96 = por %p94, %p95
      %s98 = sadd.s32 %s97, 1
      %p101 = scmp.eq.s32.totalorder %s16, 1
      %p102 = scmp.ne.s32.totalorder %s97, %s99
      %p103 = scmp.eq.s32.totalorder %s16, 0
      %p104 = por %p102, %p103
      %p105 = scmp.ne.s32.totalorder %s97, %s99
      %p106 = scmp.eq.s32.totalorder %s21, 1
      %p107 = por %p105, %p106
      %p108 = scmp.ne.s32.totalorder %s99, %s100
      %p109 = scmp.eq.s32.totalorder %s21, 0
      %p110 = por %p108, %p109
      %p111 = scmp.ne.s32.totalorder %s99, %s100
      %p112 = scmp.eq.s32.totalorder %s22, 1
      %p113 = por %p111, %p112
      %p115 = scmp.ne.s32.totalorder %s100, %s114
      %p116 = scmp.eq.s32.totalorder %s22, 0
      %p117 = por %p115, %p116
      %s119 = sadd.s32 %s118, 1
      %p122 = scmp.eq.s32.totalorder %s16, 1
      %p123 = scmp.ne.s32.totalorder %s118, %s120
      %p124 = scmp.eq.s32.totalorder %s16, 0
      %p125 = por %p123, %p124
      %p126 = scmp.ne.s32.totalorder %s118, %s120
      %p127 = scmp.eq.s32.totalorder %s21, 1
      %p128 = por %p126, %p127
      %p129 = scmp.ne.s32.totalorder %s120, %s121
      %p130 = scmp.eq.s32.totalorder %s21, 0
      %p131 = por %p129, %p130
      %p132 = scmp.ne.s32.totalorder %s120, %s121
      %p133 = scmp.eq.s32.totalorder %s22, 1
      %p134 = por %p132, %p133
      %p136 = scmp.ne.s32.totalorder %s121, %s135
      %p137 = scmp.eq.s32.totalorder %s22, 0
      %p138 = por %p136, %p137
      %s140 = sadd.s32 %s139, 1
      %p143 = scmp.eq.s32.totalorder %s16, 1
      %p144 = scmp.ne.s32.totalorder %s139, %s141
      %p145 = scmp.eq.s32.totalorder %s16, 0
      %p146 = por %p144, %p145
      %p147 = scmp.ne.s32.totalorder %s139, %s141
      %p148 = scmp.eq.s32.totalorder %s21, 1
      %p149 = por %p147, %p148
      %p150 = scmp.ne.s32.totalorder %s141, %s142
      %p151 = scmp.eq.s32.totalorder %s21, 0
      %p152 = por %p150, %p151
      %p153 = scmp.ne.s32.totalorder %s141, %s142
      %p154 = scmp.eq.s32.totalorder %s22, 1
      %p155 = por %p153, %p154
      %p157 = scmp.ne.s32.totalorder %s142, %s156
      %p158 = scmp.eq.s32.totalorder %s22, 0
      %p159 = por %p157, %p158
      %s161 = sadd.s32 %s160, 1
      %p164 = scmp.eq.s32.totalorder %s16, 1
      %p165 = scmp.ne.s32.totalorder %s160, %s162
      %p166 = scmp.eq.s32.totalorder %s16, 0
      %p167 = por %p165, %p166
      %p168 = scmp.ne.s32.totalorder %s160, %s162
      %p169 = scmp.eq.s32.totalorder %s21, 1
      %p170 = por %p168, %p169
      %p171 = scmp.ne.s32.totalorder %s162, %s163
      %p172 = scmp.eq.s32.totalorder %s21, 0
      %p173 = por %p171, %p172
      %p174 = scmp.ne.s32.totalorder %s162, %s163
      %p175 = scmp.eq.s32.totalorder %s22, 1
      %p176 = por %p174, %p175
      %p178 = scmp.ne.s32.totalorder %s163, %s177
      %p179 = scmp.eq.s32.totalorder %s22, 0
      %p180 = por %p178, %p179
      %s181 = ssub.s32 %s16, %s23
      %p182 = scmp.eq.s32.totalorder %s181, 0
      %s184 = sadd.s32 %s183, 1
      %s185 = scalar_select %p182, %s183, %s184
      %p188 = pneg %p182
      %p189 = scmp.eq.s32.totalorder %s16, 1
      %p190 = por %p188, %p189
      %p191 = scmp.ne.s32.totalorder %s183, %s186
      %p192 = scmp.eq.s32.totalorder %s16, 0
      %p193 = por %p191, %p192
      %p194 = scmp.ne.s32.totalorder %s183, %s186
      %p195 = scmp.eq.s32.totalorder %s21, 1
      %p196 = por %p194, %p195
      %p197 = scmp.ne.s32.totalorder %s186, %s187
      %p198 = scmp.eq.s32.totalorder %s21, 0
      %p199 = por %p197, %p198
      %p200 = scmp.ne.s32.totalorder %s186, %s187
      %p201 = scmp.eq.s32.totalorder %s22, 1
      %p202 = por %p200, %p201
      %p204 = scmp.ne.s32.totalorder %s187, %s203
      %p205 = scmp.eq.s32.totalorder %s22, 0
      %p206 = por %p204, %p205
      %p207 = scmp.le.s32.totalorder 1, %s16
      %p208 = scmp.lt.s32.totalorder %s16, 3
      %p209 = pnand %p207, %p208
      %p210 = pneg %p209
      // Predicated region
      $region9: #{tpu_custom_call.1} parent=5 // pred_check
        _
      $region10: #{tpu_custom_call.1} parent=5 // pred_check_branch
        %212 = sbr.rel (%p209) target = $region12
      $region11: #{tpu_custom_call.1} parent=5 // pred_region
        %s213 = ssub.s32 %s16, 1
        // Predicated region
        $region13: #{tpu_custom_call.1} parent=11 // pred_check
          %p214 = pneg %p89
        $region14: #{tpu_custom_call.1} parent=11 // pred_check_branch
          %216 = sbr.rel (%p214) target = $region16
        $region15: #{tpu_custom_call.1} parent=11 // pred_region
          _
        $region16: #{tpu_custom_call.1} parent=11 // pred_fallthru
          _
        // Predicated region
        $region17: #{tpu_custom_call.1} parent=11 // pred_check
          %p217 = pneg %p110
        $region18: #{tpu_custom_call.1} parent=11 // pred_check_branch
          %219 = sbr.rel (%p217) target = $region20
        $region19: #{tpu_custom_call.1} parent=11 // pred_region
          _
        $region20: #{tpu_custom_call.1} parent=11 // pred_fallthru
          _
        // Predicated region
        $region21: #{tpu_custom_call.1} parent=11 // pred_check
          %p220 = pneg %p131
        $region22: #{tpu_custom_call.1} parent=11 // pred_check_branch
          %222 = sbr.rel (%p220) target = $region24
        $region23: #{tpu_custom_call.1} parent=11 // pred_region
          _
        $region24: #{tpu_custom_call.1} parent=11 // pred_fallthru
          _
        // Predicated region
        $region25: #{tpu_custom_call.1} parent=11 // pred_check
          %p223 = pneg %p152
        $region26: #{tpu_custom_call.1} parent=11 // pred_check_branch
          %225 = sbr.rel (%p223) target = $region28
        $region27: #{tpu_custom_call.1} parent=11 // pred_region
          _
        $region28: #{tpu_custom_call.1} parent=11 // pred_fallthru
          _
        // Predicated region
        $region29: #{tpu_custom_call.1} parent=11 // pred_check
          %p226 = pneg %p173
        $region30: #{tpu_custom_call.1} parent=11 // pred_check_branch
          %228 = sbr.rel (%p226) target = $region32
        $region31: #{tpu_custom_call.1} parent=11 // pred_region
          _
        $region32: #{tpu_custom_call.1} parent=11 // pred_fallthru
          _
      $region12: #{tpu_custom_call.1} parent=5 // pred_fallthru
        _
      %p229 = scmp.lt.s32.totalorder %s16, 2
      // Predicated region
      $region33: #{tpu_custom_call.1} parent=5 // pred_check
        %p230 = pneg %p229
      $region34: #{tpu_custom_call.1} parent=5 // pred_check_branch
        %232 = sbr.rel (%p230) target = $region36
      $region35: #{tpu_custom_call.1} parent=5 // pred_region
        // Predicated region
        $region37: #{tpu_custom_call.1} parent=35 // pred_check
          %p233 = pneg %p36
        $region38: #{tpu_custom_call.1} parent=35 // pred_check_branch
          %235 = sbr.rel (%p233) target = $region40
        $region39: #{tpu_custom_call.1} parent=35 // pred_region
          %s236 = smul.u32 2, %s16
          %p237 = scmp.lt.s32.totalorder %s236, 3
          %s238 = scalar_select %p237, %s236, 3
          %s239 = smul.addr %s238, 8
          %s240 = scalar_lea.vmem %s0, %s239
          %s241 = smul.u32 2, %s16
        $region40: #{tpu_custom_call.1} parent=35 // pred_fallthru
          _
        // Predicated region
        $region41: #{tpu_custom_call.1} parent=35 // pred_check
          %p242 = pneg %p62
        $region42: #{tpu_custom_call.1} parent=35 // pred_check_branch
          %244 = sbr.rel (%p242) target = $region44
        $region43: #{tpu_custom_call.1} parent=35 // pred_region
          %p245 = scmp.lt.s32.totalorder %s16, 1
          %s246 = scalar_select %p245, %s16, 1
          %s247 = smul.addr %s246, 2
          %s248 = smul.addr %s247, 2
          %s249 = scalar_lea.vmem %s1, %s248
        $region44: #{tpu_custom_call.1} parent=35 // pred_fallthru
          _
      $region36: #{tpu_custom_call.1} parent=5 // pred_fallthru
        _
      %p250 = scmp.le.s32.totalorder 1, %s16
      %p251 = scmp.lt.s32.totalorder %s16, 3
      %p252 = pnand %p250, %p251
      %p253 = pneg %p252
      // Predicated region
      $region45: #{tpu_custom_call.1} parent=5 // pred_check
        _
      $region46: #{tpu_custom_call.1} parent=5 // pred_check_branch
        %255 = sbr.rel (%p252) target = $region48
      $region47: #{tpu_custom_call.1} parent=5 // pred_region
        %s256 = ssub.s32 %s16, 1
        %s257 = smul.u32 2, %s21
        %p258 = scmp.lt.s32.totalorder %s257, 3
        %s259 = scalar_select %p258, %s257, 3
        %s260 = smul.addr %s259, 8
        %s261 = scalar_lea.vmem %s0, %s260
        %p262 = pneg %p42
        %p263 = pneg %p39
        %p264 = scmp.lt.s32.totalorder %s21, 1
        %s265 = scalar_select %p264, %s21, 1
        %s266 = smul.addr %s265, 2
        %s267 = smul.addr %s266, 2
        %s268 = scalar_lea.vmem %s1, %s267
        %p269 = pneg %p68
        %p270 = pneg %p65
        %p271 = pneg %p89
        %p272 = pneg %p86
        %p273 = pneg %p110
        %p274 = pneg %p107
        %p275 = pneg %p131
        %p276 = pneg %p128
        %p277 = pneg %p152
        %p278 = pneg %p149
        %p279 = pneg %p173
        %p280 = pneg %p170
        %p281 = pneg %p199
        %p282 = pneg %p196
        %s283 = sand.u32 %s186, 1
        %s284 = scalar_lea.sflag [#allocation3], %s283
        %s285 = sand.u32 %s186, 1
        %s286 = smul.addr %s285, 16
        %s287 = scalar_lea.vmem [#allocation2], %s286
        %s288 = smul.u32 2, %s21
        %p289 = scmp.lt.s32.totalorder %s288, 3
        %s290 = scalar_select %p289, %s288, 3
        %s291 = smul.addr %s290, 8
        %s292 = scalar_lea.vmem %s0, %s291
        %s293 = smul.u32 2, %s21
        %p294 = scmp.lt.s32.totalorder %s21, 1
        %s295 = scalar_select %p294, %s21, 1
        %s296 = smul.addr %s295, 2
        %s297 = smul.addr %s296, 2
        %s298 = scalar_lea.vmem %s1, %s297
        %s299 = smul.u32 2, %s21
        %v300 = vld [vmem:[%s292] sm:$0xff]
        %v301 = vld [vmem:[%s292 + $0x8] sm:$0xff]
        %v302 = vld [vmem:[%s2] sm:$0xff]
        %v303 = vld [vmem:[%s2 + $0x8] sm:$0xff]
        %v304 = vld [vmem:[%s2 + $0x10] sm:$0xff]
        %v305 = vld [vmem:[%s2 + $0x18] sm:$0xff]
        %vm306 = vcmask 261120
        %v308 = vsel %vm306, %v300, 0
        %v311 = vsel %vm306, %v301, 0
        %313 = vmatpush.msra.mxu0 0.0
        %314 = vmatpush.msra.mxu0 0.0
        %315 = vmatpush.msra.mxu0 0.0
        %316 = vmatpush.msra.mxu0 0.0
        %317 = vmatpush.msra.mxu0 0.0
        %318 = vmatpush.msra.mxu0 0.0
        %319 = vmatpush.msra.mxu0 0.0
        %320 = vmatpush.msra.mxu0 0.0
        %321 = vmatpush.msra.mxu0 0.0
        %322 = vmatpush.msra.mxu0 0.0
        %323 = vmatpush.msra.mxu0 0.0
        %324 = vmatpush.msra.mxu0 0.0
        %v325 = vand.u32 %v305, 4294901760
        %326 = vmatpush.msra.mxu0 %v325
        %v327 = vand.u32 %v304, 4294901760
        %328 = vmatpush.msra.mxu0 %v327
        %v329 = vand.u32 %v303, 4294901760
        %330 = vmatpush.msra.mxu0 %v329
        %v331 = vand.u32 %v302, 4294901760
        %332 = vmatpush.msra.mxu0 %v331
        %v333 = vand.u32 %v308, 4294901760
        %v334 = vsub.f32 %v308, %v333
        %v335 = vand.u32 %v334, 4294901760
        %v336 = vsub.f32 %v334, %v335
        %v337 = vand.u32 %v336, 4294901760
        %338 = vmatmul.f32.gmra.mxu0 %v337
        %v339 = vpop.f32.mrf.mxu0
        %v340 = vadd.f32 0.0, %v339
        %v341 = vand.u32 %v311, 4294901760
        %v342 = vsub.f32 %v311, %v341
        %v343 = vand.u32 %v342, 4294901760
        %v344 = vsub.f32 %v342, %v343
        %v345 = vand.u32 %v344, 4294901760
        %346 = vmatmul.f32.gmra.mxu0 %v345
        %v347 = vpop.f32.mrf.mxu0
        %v348 = vadd.f32 0.0, %v347
        %349 = vdwg.mxu0
        %350 = vmatpush.msra.mxu0 0.0
        %351 = vmatpush.msra.mxu0 0.0
        %352 = vmatpush.msra.mxu0 0.0
        %353 = vmatpush.msra.mxu0 0.0
        %354 = vmatpush.msra.mxu0 0.0
        %355 = vmatpush.msra.mxu0 0.0
        %356 = vmatpush.msra.mxu0 0.0
        %357 = vmatpush.msra.mxu0 0.0
        %358 = vmatpush.msra.mxu0 0.0
        %359 = vmatpush.msra.mxu0 0.0
        %360 = vmatpush.msra.mxu0 0.0
        %361 = vmatpush.msra.mxu0 0.0
        %v362 = vand.u32 %v305, 4294901760
        %v363 = vsub.f32 %v305, %v362
        %v364 = vand.u32 %v363, 4294901760
        %v365 = vsub.f32 %v363, %v364
        %v366 = vand.u32 %v365, 4294901760
        %367 = vmatpush.msra.mxu0 %v366
        %v368 = vand.u32 %v304, 4294901760
        %v369 = vsub.f32 %v304, %v368
        %v370 = vand.u32 %v369, 4294901760
        %v371 = vsub.f32 %v369, %v370
        %v372 = vand.u32 %v371, 4294901760
        %373 = vmatpush.msra.mxu0 %v372
        %v374 = vand.u32 %v303, 4294901760
        %v375 = vsub.f32 %v303, %v374
        %v376 = vand.u32 %v375, 4294901760
        %v377 = vsub.f32 %v375, %v376
        %v378 = vand.u32 %v377, 4294901760
        %379 = vmatpush.msra.mxu0 %v378
        %v380 = vand.u32 %v302, 4294901760
        %v381 = vsub.f32 %v302, %v380
        %v382 = vand.u32 %v381, 4294901760
        %v383 = vsub.f32 %v381, %v382
        %v384 = vand.u32 %v383, 4294901760
        %385 = vmatpush.msra.mxu0 %v384
        %v386 = vand.u32 %v308, 4294901760
        %387 = vmatmul.f32.gmra.mxu0 %v386
        %v388 = vpop.f32.mrf.mxu0
        %v389 = vadd.f32 %v340, %v388
        %v390 = vand.u32 %v311, 4294901760
        %391 = vmatmul.f32.gmra.mxu0 %v390
        %v392 = vpop.f32.mrf.mxu0
        %v393 = vadd.f32 %v348, %v392
        %394 = vdwg.mxu0
        %395 = vmatpush.msra.mxu0 0.0
        %396 = vmatpush.msra.mxu0 0.0
        %397 = vmatpush.msra.mxu0 0.0
        %398 = vmatpush.msra.mxu0 0.0
        %399 = vmatpush.msra.mxu0 0.0
        %400 = vmatpush.msra.mxu0 0.0
        %401 = vmatpush.msra.mxu0 0.0
        %402 = vmatpush.msra.mxu0 0.0
        %403 = vmatpush.msra.mxu0 0.0
        %404 = vmatpush.msra.mxu0 0.0
        %405 = vmatpush.msra.mxu0 0.0
        %406 = vmatpush.msra.mxu0 0.0
        %v407 = vand.u32 %v305, 4294901760
        %v408 = vsub.f32 %v305, %v407
        %409 = vmatpush.msra.mxu0 %v408
        %v410 = vand.u32 %v304, 4294901760
        %v411 = vsub.f32 %v304, %v410
        %412 = vmatpush.msra.mxu0 %v411
        %v413 = vand.u32 %v303, 4294901760
        %v414 = vsub.f32 %v303, %v413
        %415 = vmatpush.msra.mxu0 %v414
        %v416 = vand.u32 %v302, 4294901760
        %v417 = vsub.f32 %v302, %v416
        %418 = vmatpush.msra.mxu0 %v417
        %v419 = vand.u32 %v308, 4294901760
        %v420 = vsub.f32 %v308, %v419
        %421 = vmatmul.f32.gmra.mxu0 %v420
        %v422 = vpop.f32.mrf.mxu0
        %v423 = vadd.f32 %v389, %v422
        %v424 = vand.u32 %v311, 4294901760
        %v425 = vsub.f32 %v311, %v424
        %426 = vmatmul.f32.gmra.mxu0 %v425
        %v427 = vpop.f32.mrf.mxu0
        %v428 = vadd.f32 %v393, %v427
        %429 = vdwg.mxu0
        %430 = vmatpush.msra.mxu0 0.0
        %431 = vmatpush.msra.mxu0 0.0
        %432 = vmatpush.msra.mxu0 0.0
        %433 = vmatpush.msra.mxu0 0.0
        %434 = vmatpush.msra.mxu0 0.0
        %435 = vmatpush.msra.mxu0 0.0
        %436 = vmatpush.msra.mxu0 0.0
        %437 = vmatpush.msra.mxu0 0.0
        %438 = vmatpush.msra.mxu0 0.0
        %439 = vmatpush.msra.mxu0 0.0
        %440 = vmatpush.msra.mxu0 0.0
        %441 = vmatpush.msra.mxu0 0.0
        %v442 = vand.u32 %v305, 4294901760
        %443 = vmatpush.msra.mxu0 %v442
        %v444 = vand.u32 %v304, 4294901760
        %445 = vmatpush.msra.mxu0 %v444
        %v446 = vand.u32 %v303, 4294901760
        %447 = vmatpush.msra.mxu0 %v446
        %v448 = vand.u32 %v302, 4294901760
        %449 = vmatpush.msra.mxu0 %v448
        %v450 = vand.u32 %v308, 4294901760
        %v451 = vsub.f32 %v308, %v450
        %v452 = vand.u32 %v451, 4294901760
        %453 = vmatmul.f32.gmra.mxu0 %v452
        %v454 = vpop.f32.mrf.mxu0
        %v455 = vadd.f32 %v423, %v454
        %v456 = vand.u32 %v311, 4294901760
        %v457 = vsub.f32 %v311, %v456
        %v458 = vand.u32 %v457, 4294901760
        %459 = vmatmul.f32.gmra.mxu0 %v458
        %v460 = vpop.f32.mrf.mxu0
        %v461 = vadd.f32 %v428, %v460
        %462 = vdwg.mxu0
        %463 = vmatpush.msra.mxu0 0.0
        %464 = vmatpush.msra.mxu0 0.0
        %465 = vmatpush.msra.mxu0 0.0
        %466 = vmatpush.msra.mxu0 0.0
        %467 = vmatpush.msra.mxu0 0.0
        %468 = vmatpush.msra.mxu0 0.0
        %469 = vmatpush.msra.mxu0 0.0
        %470 = vmatpush.msra.mxu0 0.0
        %471 = vmatpush.msra.mxu0 0.0
        %472 = vmatpush.msra.mxu0 0.0
        %473 = vmatpush.msra.mxu0 0.0
        %474 = vmatpush.msra.mxu0 0.0
        %v475 = vand.u32 %v305, 4294901760
        %v476 = vsub.f32 %v305, %v475
        %v477 = vand.u32 %v476, 4294901760
        %478 = vmatpush.msra.mxu0 %v477
        %v479 = vand.u32 %v304, 4294901760
        %v480 = vsub.f32 %v304, %v479
        %v481 = vand.u32 %v480, 4294901760
        %482 = vmatpush.msra.mxu0 %v481
        %v483 = vand.u32 %v303, 4294901760
        %v484 = vsub.f32 %v303, %v483
        %v485 = vand.u32 %v484, 4294901760
        %486 = vmatpush.msra.mxu0 %v485
        %v487 = vand.u32 %v302, 4294901760
        %v488 = vsub.f32 %v302, %v487
        %v489 = vand.u32 %v488, 4294901760
        %490 = vmatpush.msra.mxu0 %v489
        %v491 = vand.u32 %v308, 4294901760
        %492 = vmatmul.f32.gmra.mxu0 %v491
        %v493 = vpop.f32.mrf.mxu0
        %v494 = vadd.f32 %v455, %v493
        %v495 = vand.u32 %v311, 4294901760
        %496 = vmatmul.f32.gmra.mxu0 %v495
        %v497 = vpop.f32.mrf.mxu0
        %v498 = vadd.f32 %v461, %v497
        %499 = vdwg.mxu0
        %500 = vmatpush.msra.mxu0 0.0
        %501 = vmatpush.msra.mxu0 0.0
        %502 = vmatpush.msra.mxu0 0.0
        %503 = vmatpush.msra.mxu0 0.0
        %504 = vmatpush.msra.mxu0 0.0
        %505 = vmatpush.msra.mxu0 0.0
        %506 = vmatpush.msra.mxu0 0.0
        %507 = vmatpush.msra.mxu0 0.0
        %508 = vmatpush.msra.mxu0 0.0
        %509 = vmatpush.msra.mxu0 0.0
        %510 = vmatpush.msra.mxu0 0.0
        %511 = vmatpush.msra.mxu0 0.0
        %v512 = vand.u32 %v305, 4294901760
        %513 = vmatpush.msra.mxu0 %v512
        %v514 = vand.u32 %v304, 4294901760
        %515 = vmatpush.msra.mxu0 %v514
        %v516 = vand.u32 %v303, 4294901760
        %517 = vmatpush.msra.mxu0 %v516
        %v518 = vand.u32 %v302, 4294901760
        %519 = vmatpush.msra.mxu0 %v518
        %v520 = vand.u32 %v308, 4294901760
        %521 = vmatmul.f32.gmra.mxu0 %v520
        %v522 = vpop.f32.mrf.mxu0
        %v523 = vadd.f32 %v494, %v522
        %v524 = vand.u32 %v311, 4294901760
        %525 = vmatmul.f32.gmra.mxu0 %v524
        %v526 = vpop.f32.mrf.mxu0
        %v527 = vadd.f32 %v498, %v526
        %528 = vdwg.mxu0
        %v529 = vtanh.pop %v523
        %v530 = vtanh.pop %v527
        %v531 = vld [vmem:[%s3] sm:$0xff]
        %v532 = vld [vmem:[%s3 + $0x8] sm:$0xff]
        %v533 = vld [vmem:[%s3 + $0x10] sm:$0xff]
        %v534 = vld [vmem:[%s3 + $0x18] sm:$0xff]
        %v536 = vsel %vm306, %v529, 0
        %v539 = vsel %vm306, %v530, 0
        %541 = vmatpush.msra.mxu0 0.0
        %542 = vmatpush.msra.mxu0 0.0
        %543 = vmatpush.msra.mxu0 0.0
        %544 = vmatpush.msra.mxu0 0.0
        %545 = vmatpush.msra.mxu0 0.0
        %546 = vmatpush.msra.mxu0 0.0
        %547 = vmatpush.msra.mxu0 0.0
        %548 = vmatpush.msra.mxu0 0.0
        %549 = vmatpush.msra.mxu0 0.0
        %550 = vmatpush.msra.mxu0 0.0
        %551 = vmatpush.msra.mxu0 0.0
        %552 = vmatpush.msra.mxu0 0.0
        %v553 = vand.u32 %v534, 4294901760
        %554 = vmatpush.msra.mxu0 %v553
        %v555 = vand.u32 %v533, 4294901760
        %556 = vmatpush.msra.mxu0 %v555
        %v557 = vand.u32 %v532, 4294901760
        %558 = vmatpush.msra.mxu0 %v557
        %v559 = vand.u32 %v531, 4294901760
        %560 = vmatpush.msra.mxu0 %v559
        %v561 = vand.u32 %v536, 4294901760
        %v562 = vsub.f32 %v536, %v561
        %v563 = vand.u32 %v562, 4294901760
        %v564 = vsub.f32 %v562, %v563
        %v565 = vand.u32 %v564, 4294901760
        %566 = vmatmul.f32.gmra.mxu0 %v565
        %v567 = vpop.f32.mrf.mxu0
        %v568 = vadd.f32 0.0, %v567
        %v569 = vand.u32 %v539, 4294901760
        %v570 = vsub.f32 %v539, %v569
        %v571 = vand.u32 %v570, 4294901760
        %v572 = vsub.f32 %v570, %v571
        %v573 = vand.u32 %v572, 4294901760
        %574 = vmatmul.f32.gmra.mxu0 %v573
        %v575 = vpop.f32.mrf.mxu0
        %v576 = vadd.f32 0.0, %v575
        %577 = vdwg.mxu0
        %578 = vmatpush.msra.mxu0 0.0
        %579 = vmatpush.msra.mxu0 0.0
        %580 = vmatpush.msra.mxu0 0.0
        %581 = vmatpush.msra.mxu0 0.0
        %582 = vmatpush.msra.mxu0 0.0
        %583 = vmatpush.msra.mxu0 0.0
        %584 = vmatpush.msra.mxu0 0.0
        %585 = vmatpush.msra.mxu0 0.0
        %586 = vmatpush.msra.mxu0 0.0
        %587 = vmatpush.msra.mxu0 0.0
        %588 = vmatpush.msra.mxu0 0.0
        %589 = vmatpush.msra.mxu0 0.0
        %v590 = vand.u32 %v534, 4294901760
        %v591 = vsub.f32 %v534, %v590
        %v592 = vand.u32 %v591, 4294901760
        %v593 = vsub.f32 %v591, %v592
        %v594 = vand.u32 %v593, 4294901760
        %595 = vmatpush.msra.mxu0 %v594
        %v596 = vand.u32 %v533, 4294901760
        %v597 = vsub.f32 %v533, %v596
        %v598 = vand.u32 %v597, 4294901760
        %v599 = vsub.f32 %v597, %v598
        %v600 = vand.u32 %v599, 4294901760
        %601 = vmatpush.msra.mxu0 %v600
        %v602 = vand.u32 %v532, 4294901760
        %v603 = vsub.f32 %v532, %v602
        %v604 = vand.u32 %v603, 4294901760
        %v605 = vsub.f32 %v603, %v604
        %v606 = vand.u32 %v605, 4294901760
        %607 = vmatpush.msra.mxu0 %v606
        %v608 = vand.u32 %v531, 4294901760
        %v609 = vsub.f32 %v531, %v608
        %v610 = vand.u32 %v609, 4294901760
        %v611 = vsub.f32 %v609, %v610
        %v612 = vand.u32 %v611, 4294901760
        %613 = vmatpush.msra.mxu0 %v612
        %v614 = vand.u32 %v536, 4294901760
        %615 = vmatmul.f32.gmra.mxu0 %v614
        %v616 = vpop.f32.mrf.mxu0
        %v617 = vadd.f32 %v568, %v616
        %v618 = vand.u32 %v539, 4294901760
        %619 = vmatmul.f32.gmra.mxu0 %v618
        %v620 = vpop.f32.mrf.mxu0
        %v621 = vadd.f32 %v576, %v620
        %622 = vdwg.mxu0
        %623 = vmatpush.msra.mxu0 0.0
        %624 = vmatpush.msra.mxu0 0.0
        %625 = vmatpush.msra.mxu0 0.0
        %626 = vmatpush.msra.mxu0 0.0
        %627 = vmatpush.msra.mxu0 0.0
        %628 = vmatpush.msra.mxu0 0.0
        %629 = vmatpush.msra.mxu0 0.0
        %630 = vmatpush.msra.mxu0 0.0
        %631 = vmatpush.msra.mxu0 0.0
        %632 = vmatpush.msra.mxu0 0.0
        %633 = vmatpush.msra.mxu0 0.0
        %634 = vmatpush.msra.mxu0 0.0
        %v635 = vand.u32 %v534, 4294901760
        %v636 = vsub.f32 %v534, %v635
        %637 = vmatpush.msra.mxu0 %v636
        %v638 = vand.u32 %v533, 4294901760
        %v639 = vsub.f32 %v533, %v638
        %640 = vmatpush.msra.mxu0 %v639
        %v641 = vand.u32 %v532, 4294901760
        %v642 = vsub.f32 %v532, %v641
        %643 = vmatpush.msra.mxu0 %v642
        %v644 = vand.u32 %v531, 4294901760
        %v645 = vsub.f32 %v531, %v644
        %646 = vmatpush.msra.mxu0 %v645
        %v647 = vand.u32 %v536, 4294901760
        %v648 = vsub.f32 %v536, %v647
        %649 = vmatmul.f32.gmra.mxu0 %v648
        %v650 = vpop.f32.mrf.mxu0
        %v651 = vadd.f32 %v617, %v650
        %v652 = vand.u32 %v539, 4294901760
        %v653 = vsub.f32 %v539, %v652
        %654 = vmatmul.f32.gmra.mxu0 %v653
        %v655 = vpop.f32.mrf.mxu0
        %v656 = vadd.f32 %v621, %v655
        %657 = vdwg.mxu0
        %658 = vmatpush.msra.mxu0 0.0
        %659 = vmatpush.msra.mxu0 0.0
        %660 = vmatpush.msra.mxu0 0.0
        %661 = vmatpush.msra.mxu0 0.0
        %662 = vmatpush.msra.mxu0 0.0
        %663 = vmatpush.msra.mxu0 0.0
        %664 = vmatpush.msra.mxu0 0.0
        %665 = vmatpush.msra.mxu0 0.0
        %666 = vmatpush.msra.mxu0 0.0
        %667 = vmatpush.msra.mxu0 0.0
        %668 = vmatpush.msra.mxu0 0.0
        %669 = vmatpush.msra.mxu0 0.0
        %v670 = vand.u32 %v534, 4294901760
        %671 = vmatpush.msra.mxu0 %v670
        %v672 = vand.u32 %v533, 4294901760
        %673 = vmatpush.msra.mxu0 %v672
        %v674 = vand.u32 %v532, 4294901760
        %675 = vmatpush.msra.mxu0 %v674
        %v676 = vand.u32 %v531, 4294901760
        %677 = vmatpush.msra.mxu0 %v676
        %v678 = vand.u32 %v536, 4294901760
        %v679 = vsub.f32 %v536, %v678
        %v680 = vand.u32 %v679, 4294901760
        %681 = vmatmul.f32.gmra.mxu0 %v680
        %v682 = vpop.f32.mrf.mxu0
        %v683 = vadd.f32 %v651, %v682
        %v684 = vand.u32 %v539, 4294901760
        %v685 = vsub.f32 %v539, %v684
        %v686 = vand.u32 %v685, 4294901760
        %687 = vmatmul.f32.gmra.mxu0 %v686
        %v688 = vpop.f32.mrf.mxu0
        %v689 = vadd.f32 %v656, %v688
        %690 = vdwg.mxu0
        %691 = vmatpush.msra.mxu0 0.0
        %692 = vmatpush.msra.mxu0 0.0
        %693 = vmatpush.msra.mxu0 0.0
        %694 = vmatpush.msra.mxu0 0.0
        %695 = vmatpush.msra.mxu0 0.0
        %696 = vmatpush.msra.mxu0 0.0
        %697 = vmatpush.msra.mxu0 0.0
        %698 = vmatpush.msra.mxu0 0.0
        %699 = vmatpush.msra.mxu0 0.0
        %700 = vmatpush.msra.mxu0 0.0
        %701 = vmatpush.msra.mxu0 0.0
        %702 = vmatpush.msra.mxu0 0.0
        %v703 = vand.u32 %v534, 4294901760
        %v704 = vsub.f32 %v534, %v703
        %v705 = vand.u32 %v704, 4294901760
        %706 = vmatpush.msra.mxu0 %v705
        %v707 = vand.u32 %v533, 4294901760
        %v708 = vsub.f32 %v533, %v707
        %v709 = vand.u32 %v708, 4294901760
        %710 = vmatpush.msra.mxu0 %v709
        %v711 = vand.u32 %v532, 4294901760
        %v712 = vsub.f32 %v532, %v711
        %v713 = vand.u32 %v712, 4294901760
        %714 = vmatpush.msra.mxu0 %v713
        %v715 = vand.u32 %v531, 4294901760
        %v716 = vsub.f32 %v531, %v715
        %v717 = vand.u32 %v716, 4294901760
        %718 = vmatpush.msra.mxu0 %v717
        %v719 = vand.u32 %v536, 4294901760
        %720 = vmatmul.f32.gmra.mxu0 %v719
        %v721 = vpop.f32.mrf.mxu0
        %v722 = vadd.f32 %v683, %v721
        %v723 = vand.u32 %v539, 4294901760
        %724 = vmatmul.f32.gmra.mxu0 %v723
        %v725 = vpop.f32.mrf.mxu0
        %v726 = vadd.f32 %v689, %v725
        %727 = vdwg.mxu0
        %728 = vmatpush.msra.mxu0 0.0
        %729 = vmatpush.msra.mxu0 0.0
        %730 = vmatpush.msra.mxu0 0.0
        %731 = vmatpush.msra.mxu0 0.0
        %732 = vmatpush.msra.mxu0 0.0
        %733 = vmatpush.msra.mxu0 0.0
        %734 = vmatpush.msra.mxu0 0.0
        %735 = vmatpush.msra.mxu0 0.0
        %736 = vmatpush.msra.mxu0 0.0
        %737 = vmatpush.msra.mxu0 0.0
        %738 = vmatpush.msra.mxu0 0.0
        %739 = vmatpush.msra.mxu0 0.0
        %v740 = vand.u32 %v534, 4294901760
        %741 = vmatpush.msra.mxu0 %v740
        %v742 = vand.u32 %v533, 4294901760
        %743 = vmatpush.msra.mxu0 %v742
        %v744 = vand.u32 %v532, 4294901760
        %745 = vmatpush.msra.mxu0 %v744
        %v746 = vand.u32 %v531, 4294901760
        %747 = vmatpush.msra.mxu0 %v746
        %v748 = vand.u32 %v536, 4294901760
        %749 = vmatmul.f32.gmra.mxu0 %v748
        %v750 = vpop.f32.mrf.mxu0
        %v751 = vadd.f32 %v722, %v750
        %v752 = vand.u32 %v539, 4294901760
        %753 = vmatmul.f32.gmra.mxu0 %v752
        %v754 = vpop.f32.mrf.mxu0
        %v755 = vadd.f32 %v726, %v754
        %756 = vdwg.mxu0
        %757 = vxpose.xlu0.b32.start [1/16] %v751, 128
        %758 = vxpose.xlu0.b32.cont [2/16] %v755, 128
        %759 = vxpose.xlu0.b32.cont [3/16] 0.0, 128
        %760 = vxpose.xlu0.b32.cont [4/16] 0.0, 128
        %761 = vxpose.xlu0.b32.cont [5/16] 0.0, 128
        %762 = vxpose.xlu0.b32.cont [6/16] 0.0, 128
        %763 = vxpose.xlu0.b32.cont [7/16] 0.0, 128
        %764 = vxpose.xlu0.b32.cont [8/16] 0.0, 128
        %765 = vxpose.xlu0.b32.cont [9/16] 0.0, 128
        %766 = vxpose.xlu0.b32.cont [10/16] 0.0, 128
        %767 = vxpose.xlu0.b32.cont [11/16] 0.0, 128
        %768 = vxpose.xlu0.b32.cont [12/16] 0.0, 128
        %769 = vxpose.xlu0.b32.cont [13/16] 0.0, 128
        %770 = vxpose.xlu0.b32.cont [14/16] 0.0, 128
        %771 = vxpose.xlu0.b32.cont [15/16] 0.0, 128
        %772 = vxpose.xlu0.b32.end [16/16] 0.0, 128
        %v773 = vpop.trf.xlu0
        %v774 = vpop.trf.xlu0
        %v775 = vpop.trf.xlu0
        %v776 = vpop.trf.xlu0
        %v777 = vpop.trf.xlu0
        %v778 = vpop.trf.xlu0
        %v779 = vpop.trf.xlu0
        %v780 = vpop.trf.xlu0
        %v781 = vpop.trf.xlu0
        %v782 = vpop.trf.xlu0
        %v783 = vpop.trf.xlu0
        %v784 = vpop.trf.xlu0
        %v785 = vpop.trf.xlu0
        %v786 = vpop.trf.xlu0
        %v787 = vpop.trf.xlu0
        %v788 = vpop.trf.xlu0
        %v789 = vld [vmem:[%s4] sm:$0xff]
        %v790 = vld [vmem:[%s4 + $0x8] sm:$0xff]
        %v791 = vld [vmem:[%s4 + $0x10] sm:$0xff]
        %v792 = vld [vmem:[%s4 + $0x18] sm:$0xff]
        %v793 = vld [vmem:[%s4 + $0x20] sm:$0xff]
        %v794 = vld [vmem:[%s4 + $0x28] sm:$0xff]
        %v795 = vld [vmem:[%s4 + $0x30] sm:$0xff]
        %v796 = vld [vmem:[%s4 + $0x38] sm:$0xff]
        %v797 = vld [vmem:[%s298] sm:$0x3]
        %v798 = vld [vmem:[%s298 + $0x2] sm:$0x3]
        %v799 = vunpack.c.0.s8 %v797
        %v800 = vunpack.c.0.s8 %v798
        %802 = vset.pattern.permute.xlu0 0
        %803 = vperm.xlu0 %802, %v751
        %v804 = vpop.permute.xlu0 %803
        %807 = vset.pattern.permute.xlu0 0
        %808 = vperm.xlu0 %807, %v755
        %v809 = vpop.permute.xlu0 %808
        %811 = vset.pattern.permute.xlu0 1
        %812 = vperm.xlu0 %811, %v751
        %v813 = vpop.permute.xlu0 %812
        %815 = vset.pattern.permute.xlu0 1
        %816 = vperm.xlu0 %815, %v755
        %v817 = vpop.permute.xlu0 %816
        %819 = vset.pattern.permute.xlu0 2
        %820 = vperm.xlu0 %819, %v751
        %v821 = vpop.permute.xlu0 %820
        %823 = vset.pattern.permute.xlu0 2
        %824 = vperm.xlu0 %823, %v755
        %v825 = vpop.permute.xlu0 %824
        %827 = vset.pattern.permute.xlu0 3
        %828 = vperm.xlu0 %827, %v751
        %v829 = vpop.permute.xlu0 %828
        %831 = vset.pattern.permute.xlu0 3
        %832 = vperm.xlu0 %831, %v755
        %v833 = vpop.permute.xlu0 %832
        %vm835 = vcmask 130048
        %v836 = vsel %vm835, %v804, %v813
        %v837 = vsel %vm835, %v809, %v817
        %v838 = vsel %vm306, %v836, %v821
        %v839 = vsel %vm306, %v837, %v825
        %vm840 = vcmask 392192
        %v841 = vsel %vm840, %v838, %v829
        %v842 = vsel %vm840, %v839, %v833
        %v844 = vrot.slane %v773, 1
        %845 = vrot.lane.b32.xlu0 %v844, 16
        %v846 = vpop.permute.xlu0 %845
        %v848 = vrot.slane %v773, 2
        %849 = vrot.lane.b32.xlu0 %v848, 32
        %v850 = vpop.permute.xlu0 %849
        %v852 = vrot.slane %v773, 3
        %853 = vrot.lane.b32.xlu0 %v852, 48
        %v854 = vpop.permute.xlu0 %853
        %v856 = vsel %vm835, %v773, %v846
        %v857 = vsel %vm306, %v856, %v850
        %v858 = vsel %vm840, %v857, %v854
        %v859 = vperm.slane %v858, 4
        %v860 = vadd.f32 %v841, %v859
        %v861 = vadd.f32 %v842, %v859
        %v862 = vmul.f32 %v860, 0.2
        %v863 = vmul.f32 %v861, 0.2
        %v864 = vmax.f32 %v860, %v862
        %v865 = vmax.f32 %v861, %v863
        %866 = vrot.lane.b32.xlu0 %v799, 16
        %v867 = vpop.permute.xlu0 %866
        %868 = vrot.lane.b32.xlu0 %v800, 16
        %v869 = vpop.permute.xlu0 %868
        %870 = vrot.lane.b32.xlu0 %v799, 32
        %v871 = vpop.permute.xlu0 %870
        %872 = vrot.lane.b32.xlu0 %v800, 32
        %v873 = vpop.permute.xlu0 %872
        %874 = vrot.lane.b32.xlu0 %v799, 48
        %v875 = vpop.permute.xlu0 %874
        %876 = vrot.lane.b32.xlu0 %v800, 48
        %v877 = vpop.permute.xlu0 %876
        %v878 = vsel %vm835, %v799, %v867
        %v879 = vsel %vm835, %v800, %v869
        %v880 = vsel %vm306, %v878, %v871
        %v881 = vsel %vm306, %v879, %v873
        %v882 = vsel %vm840, %v880, %v875
        %v883 = vsel %vm840, %v881, %v877
        %vm884 = vcmp.gt.s32.totalorder %v882, 0
        %vm885 = vcmp.gt.s32.totalorder %v883, 0
        %v886 = vsel %vm884, %v864, -999.0
        %v887 = vsel %vm885, %v865, -999.0
        %vm888 = vcmask 523264
        %v889 = vsel %vm888, %v886, -inf
        %890 = vmax.xlane.f32.xlu0 %v889
        %v891 = vpop.xlane.xlu0 %890
        %v892 = vsel %vm888, %v887, -inf
        %893 = vmax.xlane.f32.xlu0 %v892
        %v894 = vpop.xlane.xlu0 %893
        %v895 = vsub.f32 %v886, %v891
        %v896 = vsub.f32 %v887, %v894
        %v897 = vmul.f32 %v895, 1.442695
        %v898 = vpow.pop %v897
        %v899 = vmul.f32 %v896, 1.442695
        %v900 = vpow.pop %v899
        %v901 = vsel %vm835, %v898, 0.0
        %902 = vadd.xlane.f32.xlu0 %v901
        %v903 = vpop.xlane.xlu0 %902
        %v904 = vsel %vm835, %v900, 0.0
        %905 = vadd.xlane.f32.xlu0 %v904
        %v906 = vpop.xlane.xlu0 %905
        %909 = vrot.lane.b32.xlu0 %v898, 112
        %v910 = vpop.permute.xlu0 %909
        %911 = vrot.lane.b32.xlu0 %v900, 112
        %v912 = vpop.permute.xlu0 %911
        %v915 = vsel %vm835, %v910, 0.0
        %916 = vadd.xlane.f32.xlu0 %v915
        %v917 = vpop.xlane.xlu0 %916
        %v918 = vsel %vm835, %v912, 0.0
        %919 = vadd.xlane.f32.xlu0 %v918
        %v920 = vpop.xlane.xlu0 %919
        %921 = vrot.lane.b32.xlu0 %v898, 96
        %v922 = vpop.permute.xlu0 %921
        %923 = vrot.lane.b32.xlu0 %v900, 96
        %v924 = vpop.permute.xlu0 %923
        %v927 = vsel %vm835, %v922, 0.0
        %928 = vadd.xlane.f32.xlu0 %v927
        %v929 = vpop.xlane.xlu0 %928
        %v930 = vsel %vm835, %v924, 0.0
        %931 = vadd.xlane.f32.xlu0 %v930
        %v932 = vpop.xlane.xlu0 %931
        %933 = vrot.lane.b32.xlu0 %v898, 80
        %v934 = vpop.permute.xlu0 %933
        %935 = vrot.lane.b32.xlu0 %v900, 80
        %v936 = vpop.permute.xlu0 %935
        %v939 = vsel %vm835, %v934, 0.0
        %940 = vadd.xlane.f32.xlu0 %v939
        %v941 = vpop.xlane.xlu0 %940
        %v942 = vsel %vm835, %v936, 0.0
        %943 = vadd.xlane.f32.xlu0 %v942
        %v944 = vpop.xlane.xlu0 %943
        %vm945 = vcmask 64512
        %v946 = vsel %vm945, %v903, %v917
        %v947 = vsel %vm945, %v906, %v920
        %v948 = vsel %vm835, %v946, %v929
        %v949 = vsel %vm835, %v947, %v932
        %vm950 = vcmask 195584
        %v951 = vsel %vm950, %v948, %v941
        %v952 = vsel %vm950, %v949, %v944
        %v953 = vmul.f32 %v523, %v789
        %v954 = vmul.f32 %v527, %v790
        %v955 = vmul.f32 %v523, %v791
        %v956 = vmul.f32 %v527, %v792
        %v957 = vmul.f32 %v523, %v793
        %v958 = vmul.f32 %v527, %v794
        %v959 = vmul.f32 %v523, %v795
        %v960 = vmul.f32 %v527, %v796
        %v961 = vsel %vm888, %v898, 0
        %v963 = vsel %vm888, %v900, 0
        %965 = vmatpush.msra.mxu0 0.0
        %966 = vmatpush.msra.mxu0 0.0
        %967 = vmatpush.msra.mxu0 0.0
        %968 = vmatpush.msra.mxu0 0.0
        %969 = vmatpush.msra.mxu0 0.0
        %970 = vmatpush.msra.mxu0 0.0
        %971 = vmatpush.msra.mxu0 0.0
        %972 = vmatpush.msra.mxu0 0.0
        %v973 = vand.u32 %v960, 4294901760
        %974 = vmatpush.msra.mxu0 %v973
        %v975 = vand.u32 %v959, 4294901760
        %976 = vmatpush.msra.mxu0 %v975
        %v977 = vand.u32 %v958, 4294901760
        %978 = vmatpush.msra.mxu0 %v977
        %v979 = vand.u32 %v957, 4294901760
        %980 = vmatpush.msra.mxu0 %v979
        %v981 = vand.u32 %v956, 4294901760
        %982 = vmatpush.msra.mxu0 %v981
        %v983 = vand.u32 %v955, 4294901760
        %984 = vmatpush.msra.mxu0 %v983
        %v985 = vand.u32 %v954, 4294901760
        %986 = vmatpush.msra.mxu0 %v985
        %v987 = vand.u32 %v953, 4294901760
        %988 = vmatpush.msra.mxu0 %v987
        %v989 = vand.u32 %v961, 4294901760
        %v990 = vsub.f32 %v961, %v989
        %v991 = vand.u32 %v990, 4294901760
        %v992 = vsub.f32 %v990, %v991
        %v993 = vand.u32 %v992, 4294901760
        %994 = vmatmul.f32.gmra.mxu0 %v993
        %v995 = vpop.f32.mrf.mxu0
        %v996 = vadd.f32 0.0, %v995
        %v997 = vand.u32 %v963, 4294901760
        %v998 = vsub.f32 %v963, %v997
        %v999 = vand.u32 %v998, 4294901760
        %v1000 = vsub.f32 %v998, %v999
        %v1001 = vand.u32 %v1000, 4294901760
        %1002 = vmatmul.f32.gmra.mxu0 %v1001
        %v1003 = vpop.f32.mrf.mxu0
        %v1004 = vadd.f32 0.0, %v1003
        %1005 = vdwg.mxu0
        %1006 = vmatpush.msra.mxu0 0.0
        %1007 = vmatpush.msra.mxu0 0.0
        %1008 = vmatpush.msra.mxu0 0.0
        %1009 = vmatpush.msra.mxu0 0.0
        %1010 = vmatpush.msra.mxu0 0.0
        %1011 = vmatpush.msra.mxu0 0.0
        %1012 = vmatpush.msra.mxu0 0.0
        %1013 = vmatpush.msra.mxu0 0.0
        %v1014 = vand.u32 %v960, 4294901760
        %v1015 = vsub.f32 %v960, %v1014
        %v1016 = vand.u32 %v1015, 4294901760
        %v1017 = vsub.f32 %v1015, %v1016
        %v1018 = vand.u32 %v1017, 4294901760
        %1019 = vmatpush.msra.mxu0 %v1018
        %v1020 = vand.u32 %v959, 4294901760
        %v1021 = vsub.f32 %v959, %v1020
        %v1022 = vand.u32 %v1021, 4294901760
        %v1023 = vsub.f32 %v1021, %v1022
        %v1024 = vand.u32 %v1023, 4294901760
        %1025 = vmatpush.msra.mxu0 %v1024
        %v1026 = vand.u32 %v958, 4294901760
        %v1027 = vsub.f32 %v958, %v1026
        %v1028 = vand.u32 %v1027, 4294901760
        %v1029 = vsub.f32 %v1027, %v1028
        %v1030 = vand.u32 %v1029, 4294901760
        %1031 = vmatpush.msra.mxu0 %v1030
        %v1032 = vand.u32 %v957, 4294901760
        %v1033 = vsub.f32 %v957, %v1032
        %v1034 = vand.u32 %v1033, 4294901760
        %v1035 = vsub.f32 %v1033, %v1034
        %v1036 = vand.u32 %v1035, 4294901760
        %1037 = vmatpush.msra.mxu0 %v1036
        %v1038 = vand.u32 %v956, 4294901760
        %v1039 = vsub.f32 %v956, %v1038
        %v1040 = vand.u32 %v1039, 4294901760
        %v1041 = vsub.f32 %v1039, %v1040
        %v1042 = vand.u32 %v1041, 4294901760
        %1043 = vmatpush.msra.mxu0 %v1042
        %v1044 = vand.u32 %v955, 4294901760
        %v1045 = vsub.f32 %v955, %v1044
        %v1046 = vand.u32 %v1045, 4294901760
        %v1047 = vsub.f32 %v1045, %v1046
        %v1048 = vand.u32 %v1047, 4294901760
        %1049 = vmatpush.msra.mxu0 %v1048
        %v1050 = vand.u32 %v954, 4294901760
        %v1051 = vsub.f32 %v954, %v1050
        %v1052 = vand.u32 %v1051, 4294901760
        %v1053 = vsub.f32 %v1051, %v1052
        %v1054 = vand.u32 %v1053, 4294901760
        %1055 = vmatpush.msra.mxu0 %v1054
        %v1056 = vand.u32 %v953, 4294901760
        %v1057 = vsub.f32 %v953, %v1056
        %v1058 = vand.u32 %v1057, 4294901760
        %v1059 = vsub.f32 %v1057, %v1058
        %v1060 = vand.u32 %v1059, 4294901760
        %1061 = vmatpush.msra.mxu0 %v1060
        %v1062 = vand.u32 %v961, 4294901760
        %1063 = vmatmul.f32.gmra.mxu0 %v1062
        %v1064 = vpop.f32.mrf.mxu0
        %v1065 = vadd.f32 %v996, %v1064
        %v1066 = vand.u32 %v963, 4294901760
        %1067 = vmatmul.f32.gmra.mxu0 %v1066
        %v1068 = vpop.f32.mrf.mxu0
        %v1069 = vadd.f32 %v1004, %v1068
        %1070 = vdwg.mxu0
        %1071 = vmatpush.msra.mxu0 0.0
        %1072 = vmatpush.msra.mxu0 0.0
        %1073 = vmatpush.msra.mxu0 0.0
        %1074 = vmatpush.msra.mxu0 0.0
        %1075 = vmatpush.msra.mxu0 0.0
        %1076 = vmatpush.msra.mxu0 0.0
        %1077 = vmatpush.msra.mxu0 0.0
        %1078 = vmatpush.msra.mxu0 0.0
        %v1079 = vand.u32 %v960, 4294901760
        %v1080 = vsub.f32 %v960, %v1079
        %1081 = vmatpush.msra.mxu0 %v1080
        %v1082 = vand.u32 %v959, 4294901760
        %v1083 = vsub.f32 %v959, %v1082
        %1084 = vmatpush.msra.mxu0 %v1083
        %v1085 = vand.u32 %v958, 4294901760
        %v1086 = vsub.f32 %v958, %v1085
        %1087 = vmatpush.msra.mxu0 %v1086
        %v1088 = vand.u32 %v957, 4294901760
        %v1089 = vsub.f32 %v957, %v1088
        %1090 = vmatpush.msra.mxu0 %v1089
        %v1091 = vand.u32 %v956, 4294901760
        %v1092 = vsub.f32 %v956, %v1091
        %1093 = vmatpush.msra.mxu0 %v1092
        %v1094 = vand.u32 %v955, 4294901760
        %v1095 = vsub.f32 %v955, %v1094
        %1096 = vmatpush.msra.mxu0 %v1095
        %v1097 = vand.u32 %v954, 4294901760
        %v1098 = vsub.f32 %v954, %v1097
        %1099 = vmatpush.msra.mxu0 %v1098
        %v1100 = vand.u32 %v953, 4294901760
        %v1101 = vsub.f32 %v953, %v1100
        %1102 = vmatpush.msra.mxu0 %v1101
        %v1103 = vand.u32 %v961, 4294901760
        %v1104 = vsub.f32 %v961, %v1103
        %1105 = vmatmul.f32.gmra.mxu0 %v1104
        %v1106 = vpop.f32.mrf.mxu0
        %v1107 = vadd.f32 %v1065, %v1106
        %v1108 = vand.u32 %v963, 4294901760
        %v1109 = vsub.f32 %v963, %v1108
        %1110 = vmatmul.f32.gmra.mxu0 %v1109
        %v1111 = vpop.f32.mrf.mxu0
        %v1112 = vadd.f32 %v1069, %v1111
        %1113 = vdwg.mxu0
        %1114 = vmatpush.msra.mxu0 0.0
        %1115 = vmatpush.msra.mxu0 0.0
        %1116 = vmatpush.msra.mxu0 0.0
        %1117 = vmatpush.msra.mxu0 0.0
        %1118 = vmatpush.msra.mxu0 0.0
        %1119 = vmatpush.msra.mxu0 0.0
        %1120 = vmatpush.msra.mxu0 0.0
        %1121 = vmatpush.msra.mxu0 0.0
        %v1122 = vand.u32 %v960, 4294901760
        %1123 = vmatpush.msra.mxu0 %v1122
        %v1124 = vand.u32 %v959, 4294901760
        %1125 = vmatpush.msra.mxu0 %v1124
        %v1126 = vand.u32 %v958, 4294901760
        %1127 = vmatpush.msra.mxu0 %v1126
        %v1128 = vand.u32 %v957, 4294901760
        %1129 = vmatpush.msra.mxu0 %v1128
        %v1130 = vand.u32 %v956, 4294901760
        %1131 = vmatpush.msra.mxu0 %v1130
        %v1132 = vand.u32 %v955, 4294901760
        %1133 = vmatpush.msra.mxu0 %v1132
        %v1134 = vand.u32 %v954, 4294901760
        %1135 = vmatpush.msra.mxu0 %v1134
        %v1136 = vand.u32 %v953, 4294901760
        %1137 = vmatpush.msra.mxu0 %v1136
        %v1138 = vand.u32 %v961, 4294901760
        %v1139 = vsub.f32 %v961, %v1138
        %v1140 = vand.u32 %v1139, 4294901760
        %1141 = vmatmul.f32.gmra.mxu0 %v1140
        %v1142 = vpop.f32.mrf.mxu0
        %v1143 = vadd.f32 %v1107, %v1142
        %v1144 = vand.u32 %v963, 4294901760
        %v1145 = vsub.f32 %v963, %v1144
        %v1146 = vand.u32 %v1145, 4294901760
        %1147 = vmatmul.f32.gmra.mxu0 %v1146
        %v1148 = vpop.f32.mrf.mxu0
        %v1149 = vadd.f32 %v1112, %v1148
        %1150 = vdwg.mxu0
        %1151 = vmatpush.msra.mxu0 0.0
        %1152 = vmatpush.msra.mxu0 0.0
        %1153 = vmatpush.msra.mxu0 0.0
        %1154 = vmatpush.msra.mxu0 0.0
        %1155 = vmatpush.msra.mxu0 0.0
        %1156 = vmatpush.msra.mxu0 0.0
        %1157 = vmatpush.msra.mxu0 0.0
        %1158 = vmatpush.msra.mxu0 0.0
        %v1159 = vand.u32 %v960, 4294901760
        %v1160 = vsub.f32 %v960, %v1159
        %v1161 = vand.u32 %v1160, 4294901760
        %1162 = vmatpush.msra.mxu0 %v1161
        %v1163 = vand.u32 %v959, 4294901760
        %v1164 = vsub.f32 %v959, %v1163
        %v1165 = vand.u32 %v1164, 4294901760
        %1166 = vmatpush.msra.mxu0 %v1165
        %v1167 = vand.u32 %v958, 4294901760
        %v1168 = vsub.f32 %v958, %v1167
        %v1169 = vand.u32 %v1168, 4294901760
        %1170 = vmatpush.msra.mxu0 %v1169
        %v1171 = vand.u32 %v957, 4294901760
        %v1172 = vsub.f32 %v957, %v1171
        %v1173 = vand.u32 %v1172, 4294901760
        %1174 = vmatpush.msra.mxu0 %v1173
        %v1175 = vand.u32 %v956, 4294901760
        %v1176 = vsub.f32 %v956, %v1175
        %v1177 = vand.u32 %v1176, 4294901760
        %1178 = vmatpush.msra.mxu0 %v1177
        %v1179 = vand.u32 %v955, 4294901760
        %v1180 = vsub.f32 %v955, %v1179
        %v1181 = vand.u32 %v1180, 4294901760
        %1182 = vmatpush.msra.mxu0 %v1181
        %v1183 = vand.u32 %v954, 4294901760
        %v1184 = vsub.f32 %v954, %v1183
        %v1185 = vand.u32 %v1184, 4294901760
        %1186 = vmatpush.msra.mxu0 %v1185
        %v1187 = vand.u32 %v953, 4294901760
        %v1188 = vsub.f32 %v953, %v1187
        %v1189 = vand.u32 %v1188, 4294901760
        %1190 = vmatpush.msra.mxu0 %v1189
        %v1191 = vand.u32 %v961, 4294901760
        %1192 = vmatmul.f32.gmra.mxu0 %v1191
        %v1193 = vpop.f32.mrf.mxu0
        %v1194 = vadd.f32 %v1143, %v1193
        %v1195 = vand.u32 %v963, 4294901760
        %1196 = vmatmul.f32.gmra.mxu0 %v1195
        %v1197 = vpop.f32.mrf.mxu0
        %v1198 = vadd.f32 %v1149, %v1197
        %1199 = vdwg.mxu0
        %1200 = vmatpush.msra.mxu0 0.0
        %1201 = vmatpush.msra.mxu0 0.0
        %1202 = vmatpush.msra.mxu0 0.0
        %1203 = vmatpush.msra.mxu0 0.0
        %1204 = vmatpush.msra.mxu0 0.0
        %1205 = vmatpush.msra.mxu0 0.0
        %1206 = vmatpush.msra.mxu0 0.0
        %1207 = vmatpush.msra.mxu0 0.0
        %v1208 = vand.u32 %v960, 4294901760
        %1209 = vmatpush.msra.mxu0 %v1208
        %v1210 = vand.u32 %v959, 4294901760
        %1211 = vmatpush.msra.mxu0 %v1210
        %v1212 = vand.u32 %v958, 4294901760
        %1213 = vmatpush.msra.mxu0 %v1212
        %v1214 = vand.u32 %v957, 4294901760
        %1215 = vmatpush.msra.mxu0 %v1214
        %v1216 = vand.u32 %v956, 4294901760
        %1217 = vmatpush.msra.mxu0 %v1216
        %v1218 = vand.u32 %v955, 4294901760
        %1219 = vmatpush.msra.mxu0 %v1218
        %v1220 = vand.u32 %v954, 4294901760
        %1221 = vmatpush.msra.mxu0 %v1220
        %v1222 = vand.u32 %v953, 4294901760
        %1223 = vmatpush.msra.mxu0 %v1222
        %v1224 = vand.u32 %v961, 4294901760
        %1225 = vmatmul.f32.gmra.mxu0 %v1224
        %v1226 = vpop.f32.mrf.mxu0
        %v1227 = vadd.f32 %v1194, %v1226
        %v1228 = vand.u32 %v963, 4294901760
        %1229 = vmatmul.f32.gmra.mxu0 %v1228
        %v1230 = vpop.f32.mrf.mxu0
        %v1231 = vadd.f32 %v1198, %v1230
        %1232 = vdwg.mxu0
        %v1233 = vrcp.pop %v951
        %v1234 = vmul.f32 %v951, %v1233
        %v1235 = vsub.f32 1.0, %v1234
        %v1236 = vmul.f32 %v1233, %v1235
        %v1237 = vadd.f32 %v1233, %v1236
        %vm1238 = vweird.f32 %v951
        %vm1239 = vweird.f32 %v1233
        %vm1240 = vmor %vm1238, %vm1239
        %v1241 = vsel %vm1240, %v1233, %v1237
        %v1242 = vand.u32 2147483647, %v951
        %vm1243 = vcmp.eq.f32.partialorder %v1242, 8.507059e+37
        %v1244 = vand.u32 %v951, 2147483648
        %v1245 = vor.u32 1.1754944e-38, %v1244
        %v1246 = vsel %vm1243, %v1245, %v1241
        %v1247 = vmul.f32 %v1227, %v1246
        %v1248 = vrcp.pop %v952
        %v1249 = vmul.f32 %v952, %v1248
        %v1250 = vsub.f32 1.0, %v1249
        %v1251 = vmul.f32 %v1248, %v1250
        %v1252 = vadd.f32 %v1248, %v1251
        %vm1253 = vweird.f32 %v952
        %vm1254 = vweird.f32 %v1248
        %vm1255 = vmor %vm1253, %vm1254
        %v1256 = vsel %vm1255, %v1248, %v1252
        %v1257 = vand.u32 2147483647, %v952
        %vm1258 = vcmp.eq.f32.partialorder %v1257, 8.507059e+37
        %v1259 = vand.u32 %v952, 2147483648
        %v1260 = vor.u32 1.1754944e-38, %v1259
        %v1261 = vsel %vm1258, %v1260, %v1256
        %v1262 = vmul.f32 %v1231, %v1261
        %v1263 = vld [vmem:[%s5] sm:$0x1]
        %v1265 = vperm.slane %v1263, 0
        %v1267 = vadd.f32 %v1247, %v1265
        %v1268 = vadd.f32 %v1262, %v1265
        %vm1269 = vcmp.gt.f32.partialorder %v1267, 0.0
        %vm1270 = vcmp.gt.f32.partialorder %v1268, 0.0
        %v1271 = vmin.f32 %v1267, 0.0
        %v1272 = vmin.f32 %v1268, 0.0
        %v1273 = vmul.f32 %v1271, 1.442695
        %v1274 = vpow.pop %v1273
        %v1275 = vmul.f32 %v1272, 1.442695
        %v1276 = vpow.pop %v1275
        %v1277 = vsub.f32 %v1274, 1.0
        %v1278 = vsub.f32 %v1276, 1.0
        %v1279 = vsel %vm1269, %v1267, %v1277
        %v1280 = vsel %vm1270, %v1268, %v1278
        %v1281 = vld [vmem:[%s6] sm:$0x1]
        %v1283 = vperm.slane %v1281, 0
        %1284 = vrot.lane.b32.xlu0 %v1283, 32
        %v1285 = vpop.permute.xlu0 %1284
        %v1287 = vadd.f32 %v523, %v1285
        %v1288 = vadd.f32 %v527, %v1285
        %v1289 = vsub.f32 0.0, %v1287
        %v1290 = vsub.f32 0.0, %v1288
        %v1291 = vmul.f32 %v1289, 1.442695
        %v1292 = vpow.pop %v1291
        %v1293 = vmul.f32 %v1290, 1.442695
        %v1294 = vpow.pop %v1293
        %v1295 = vadd.f32 %v1292, 1.0
        %v1296 = vadd.f32 %v1294, 1.0
        %v1297 = vrcp.pop %v1295
        %v1298 = vmul.f32 %v1295, %v1297
        %v1299 = vsub.f32 1.0, %v1298
        %v1300 = vmul.f32 %v1297, %v1299
        %v1301 = vadd.f32 %v1297, %v1300
        %vm1302 = vweird.f32 %v1295
        %vm1303 = vweird.f32 %v1297
        %vm1304 = vmor %vm1302, %vm1303
        %v1305 = vsel %vm1304, %v1297, %v1301
        %v1306 = vand.u32 2147483647, %v1295
        %vm1307 = vcmp.eq.f32.partialorder %v1306, 8.507059e+37
        %v1308 = vand.u32 %v1295, 2147483648
        %v1309 = vor.u32 1.1754944e-38, %v1308
        %v1310 = vsel %vm1307, %v1309, %v1305
        %v1311 = vmul.f32 1.0, %v1310
        %v1312 = vrcp.pop %v1296
        %v1313 = vmul.f32 %v1296, %v1312
        %v1314 = vsub.f32 1.0, %v1313
        %v1315 = vmul.f32 %v1312, %v1314
        %v1316 = vadd.f32 %v1312, %v1315
        %vm1317 = vweird.f32 %v1296
        %vm1318 = vweird.f32 %v1312
        %vm1319 = vmor %vm1317, %vm1318
        %v1320 = vsel %vm1319, %v1312, %v1316
        %v1321 = vand.u32 2147483647, %v1296
        %vm1322 = vcmp.eq.f32.partialorder %v1321, 8.507059e+37
        %v1323 = vand.u32 %v1296, 2147483648
        %v1324 = vor.u32 1.1754944e-38, %v1323
        %v1325 = vsel %vm1322, %v1324, %v1320
        %v1326 = vmul.f32 1.0, %v1325
        %1329 = vrot.lane.b32.xlu0 %v1279, 32
        %v1330 = vpop.permute.xlu0 %1329
        %1331 = vrot.lane.b32.xlu0 %v1280, 32
        %v1332 = vpop.permute.xlu0 %1331
        %v1335 = vmul.f32 %v1311, %v1330
        %v1336 = vmul.f32 %v1326, %v1332
        %v1337 = vsub.f32 1.0, %v1311
        %v1338 = vsub.f32 1.0, %v1326
        %1339 = vrot.lane.b32.xlu0 %v300, 32
        %v1340 = vpop.permute.xlu0 %1339
        %1341 = vrot.lane.b32.xlu0 %v301, 32
        %v1342 = vpop.permute.xlu0 %1341
        %v1345 = vmul.f32 %v1337, %v1340
        %v1346 = vmul.f32 %v1338, %v1342
        %v1347 = vadd.f32 %v1335, %v1345
        %v1348 = vadd.f32 %v1336, %v1346
        %1351 = vrot.lane.b32.xlu0 %v1347, 96
        %v1352 = vpop.permute.xlu0 %1351
        %1353 = vrot.lane.b32.xlu0 %v1348, 96
        %v1354 = vpop.permute.xlu0 %1353
        %1357 = vst.msk [vmem:[%s287] sm:$0xff] %vm306, %v1352
        %1358 = vst.msk [vmem:[%s287 + $0x8] sm:$0xff] %vm306, %v1354
        %s1359 = sand.u32 %s186, 1
        %s1360 = scalar_lea.sflag [#allocation3], %s1359
        %s1361 = sand.u32 %s186, 1
        %s1362 = smul.addr %s1361, 16
        %s1363 = scalar_lea.vmem [#allocation2], %s1362
        // Predicated region
        $region49: #{tpu_custom_call.1} parent=47 // pred_check
          %p1364 = pneg %p196
        $region50: #{tpu_custom_call.1} parent=47 // pred_check_branch
          %1366 = sbr.rel (%p1364) target = $region52
        $region51: #{tpu_custom_call.1} parent=47 // pred_region
          %s1367 = smul.u32 2, %s21
          %1369 = vsyncadd %s1360, 0
          %s1370 = smul.addr %s1367, 8
          %s1371 = scalar_lea.hbm %s7, %s1370
          %s1372 = sshll.u32 %s1363, 4
          %s1373 = int_to_ptr.vmem [resolvable:$true] %s1372
          %s1374 = sshll.u32 %s1371, 4
          %s1375 = int_to_ptr.hbm [resolvable:$true] %s1374
          %1380 = dma.vmem_to_hbm [thread:$0]  %s1373, 256, %s1375, %s1360, 128, 128, 8
        $region52: #{tpu_custom_call.1} parent=47 // pred_fallthru
          _
      $region48: #{tpu_custom_call.1} parent=5 // pred_fallthru
        _
      %p1381 = scmp.le.s32.totalorder 2, %s16
      // Predicated region
      $region53: #{tpu_custom_call.1} parent=5 // pred_check
        %p1382 = pneg %p1381
      $region54: #{tpu_custom_call.1} parent=5 // pred_check_branch
        %1384 = sbr.rel (%p1382) target = $region56
      $region55: #{tpu_custom_call.1} parent=5 // pred_region
        %s1385 = ssub.s32 %s16, 2
        // Predicated region
        $region57: #{tpu_custom_call.1} parent=55 // pred_check
          %p1386 = pneg %p202
        $region58: #{tpu_custom_call.1} parent=55 // pred_check_branch
          %1388 = sbr.rel (%p1386) target = $region60
        $region59: #{tpu_custom_call.1} parent=55 // pred_region
          %s1389 = sand.u32 %s187, 1
          %s1390 = scalar_lea.sflag [#allocation3], %s1389
          %s1391 = sand.u32 %s187, 1
          %s1392 = smul.addr %s1391, 16
          %s1393 = scalar_lea.vmem [#allocation2], %s1392
          %1395 = dma.done %s1390, 256
        $region60: #{tpu_custom_call.1} parent=55 // pred_fallthru
          _
      $region56: #{tpu_custom_call.1} parent=5 // pred_fallthru
        _
    $region6: #{tpu_custom_call.1} parent=1 // loop_footer
      %s20 = sadd.s32 1, %s16
    $region7: #{tpu_custom_call.1} parent=1 // loop_footer_branch
      %15 = sbr.rel target = $region3
    $region8: #{tpu_custom_call.1} parent=1 // loop_exit
      _
    %1396 = vsyncpa [#allocation3], 1
    %s1397 = scalar_lea.sflag [#allocation3], 1
    %1398 = vsyncpa %s1397, 1

</llo_original>
